<compile_context>
chip_gen: v6e
topology: v6e:2x2x1
jax: 0.10.0
libtpu: 0.0.40
codegen_flags: <defaults>
</compile_context>

<pallas_src>
import jax
import jax.numpy as jnp
from jax.experimental import pallas as pl
from jax.experimental.pallas import tpu as pltpu


def _round_up(x, m):
    return ((x + m - 1) // m) * m


# ----------------------------------------------------------------------------
# Fused kernel: all RNN layers + fc projection, single invocation, all-in-vreg.
#   x_ref  : (T*BP, IP)        time-major, zero-padded input
#   w_ref  : (R, HP)           packed weight slab (see prepare_params)
#   out_ref: (T*BP, HP)        fc output, lane-dense (cols >= O are zero)
#   hid_ref: (n_layers*BP, HP) final hidden per layer, lane-dense
# ----------------------------------------------------------------------------
def _make_fused_rnn_fc_kernel(n_layers, T, BP, HP, layer_offsets, fc_off, bfc_off):
    def kernel(x_ref, w_ref, out_ref, hid_ref):
        acts = x_ref[...]                                   # current layer input
        for l in range(n_layers):
            off_ih, rows_ih, off_hh, off_b = layer_offsets[l]
            w_ih = w_ref[pl.ds(off_ih, rows_ih), :]          # (rows_ih, HP)
            w_hh = w_ref[pl.ds(off_hh, HP), :]               # (HP, HP)
            bias = w_ref[pl.ds(off_b, 1), :]                 # (1, HP)

            # Hoisted input projection for the whole sequence (one matmul).
            p = jnp.dot(acts, w_ih, preferred_element_type=jnp.float32) + bias

            # t = 0: zero initial hidden => h = tanh(P[0]) (no recurrent matmul)
            h = jnp.tanh(p[0:BP, :])
            outs = [h]

            # t = 1 .. T-1: fully unrolled serial recurrence, static
            # sublane-aligned value slices, no VMEM round-trips.
            for t in range(1, T):
                p_t = p[t * BP:(t + 1) * BP, :]
                h = jnp.tanh(p_t + jnp.dot(h, w_hh,
                                           preferred_element_type=jnp.float32))
                outs.append(h)

            hid_ref[pl.ds(l * BP, BP), :] = h                # final hidden, layer l
            acts = jnp.concatenate(outs, axis=0)             # (T*BP, HP)

        # Output projection over the whole sequence at once (lane-dense store).
        w_fc = w_ref[pl.ds(fc_off, HP), :]
        b_fc = w_ref[pl.ds(bfc_off, 1), :]
        out_ref[...] = jnp.dot(acts, w_fc,
                               preferred_element_type=jnp.float32) + b_fc

    return kernel


# ----------------------------------------------------------------------------
# One-time parameter packing (pre-transpose, pre-fuse biases, zero-pad).
# Layout (all segments 8-row aligned, lane width HP):
#   per layer l : [ w_ih^T (rows_ih x HP) | w_hh^T (HP x HP) | b_ih+b_hh (8 x HP) ]
#   then        : [ w_fc^T (HP x HP)      | b_fc (8 x HP) ]
# ----------------------------------------------------------------------------
def prepare_params(params, input_size, hidden_dim, output_size):
    HP = _round_up(max(hidden_dim, 128), 128)
    IP = _round_up(input_size, 8)
    segs, layer_offsets = [], []
    off = 0
    for l, (w_ih, w_hh, b_ih, b_hh) in enumerate(params["rnn"]):
        in_dim = w_ih.shape[1]
        rows_ih = IP if l == 0 else HP
        s_ih = jnp.zeros((rows_ih, HP), jnp.float32).at[:in_dim, :hidden_dim].set(
            w_ih.T.astype(jnp.float32))
        s_hh = jnp.zeros((HP, HP), jnp.float32).at[:hidden_dim, :hidden_dim].set(
            w_hh.T.astype(jnp.float32))
        s_b = jnp.zeros((8, HP), jnp.float32).at[0, :hidden_dim].set(
            (b_ih + b_hh).astype(jnp.float32))
        layer_offsets.append((off, rows_ih, off + rows_ih, off + rows_ih + HP))
        segs += [s_ih, s_hh, s_b]
        off += rows_ih + HP + 8

    w_fc, b_fc = params["fc"]
    s_fc = jnp.zeros((HP, HP), jnp.float32).at[:hidden_dim, :output_size].set(
        w_fc.T.astype(jnp.float32))
    s_bfc = jnp.zeros((8, HP), jnp.float32).at[0, :output_size].set(
        b_fc.astype(jnp.float32))
    fc_off, bfc_off = off, off + HP

    slab = jnp.concatenate(segs + [s_fc, s_bfc], axis=0)
    meta = dict(HP=HP, IP=IP, layer_offsets=tuple(layer_offsets),
                fc_off=fc_off, bfc_off=bfc_off)
    return slab, meta


# ----------------------------------------------------------------------------
# Forward wrapper: tiny layout plumbing + the single fused pallas_call.
# ----------------------------------------------------------------------------
def make_model_forward(meta, n_layers, hidden_dim, output_size):
    HP, IP = meta["HP"], meta["IP"]
    layer_offsets = meta["layer_offsets"]
    fc_off, bfc_off = meta["fc_off"], meta["bfc_off"]

    @jax.jit
    def forward(wslab, x_btf):
        B, T, I = x_btf.shape
        BP = _round_up(B, 8)

        kernel = _make_fused_rnn_fc_kernel(
            n_layers, T, BP, HP, layer_offsets, fc_off, bfc_off)

        # batch_first -> time-major; pad batch to BP and features to IP.
        x_tbi = jnp.transpose(x_btf, (1, 0, 2)).astype(jnp.float32)
        x_pad = jnp.zeros((T, BP, IP), jnp.float32).at[:, :B, :I].set(x_tbi)
        x2d = x_pad.reshape(T * BP, IP)

        out_pad, hid_pad = pl.pallas_call(
            kernel,
            out_shape=(jax.ShapeDtypeStruct((T * BP, HP), jnp.float32),
                       jax.ShapeDtypeStruct((n_layers * BP, HP), jnp.float32)),
            in_specs=[pl.BlockSpec(memory_space=pltpu.MemorySpace.VMEM)] * 2,
            out_specs=(pl.BlockSpec(memory_space=pltpu.MemorySpace.VMEM),
                       pl.BlockSpec(memory_space=pltpu.MemorySpace.VMEM)),
        )(x2d, wslab)

        out = jnp.transpose(
            out_pad.reshape(T, BP, HP)[:, :B, :output_size], (1, 0, 2))
        hidden = hid_pad.reshape(n_layers, BP, HP)[:, :B, :hidden_dim]
        return out, hidden

    return forward


# ----------------------------------------------------------------------------
# Deterministic parameter init (PyTorch-style U(-1/sqrt(H), 1/sqrt(H)))
# ----------------------------------------------------------------------------
def init_params(key, input_size, hidden_dim, output_size, n_layers):
    bound = 1.0 / jnp.sqrt(jnp.float32(hidden_dim))
    rnn_params = []
    for layer in range(n_layers):
        in_dim = input_size if layer == 0 else hidden_dim
        key, k1, k2, k3, k4 = jax.random.split(key, 5)
        w_ih = jax.random.uniform(k1, (hidden_dim, in_dim), jnp.float32, -bound, bound)
        w_hh = jax.random.uniform(k2, (hidden_dim, hidden_dim), jnp.float32, -bound, bound)
        b_ih = jax.random.uniform(k3, (hidden_dim,), jnp.float32, -bound, bound)
        b_hh = jax.random.uniform(k4, (hidden_dim,), jnp.float32, -bound, bound)
        rnn_params.append((w_ih, w_hh, b_ih, b_hh))
    key, k5, k6 = jax.random.split(key, 3)
    w_fc = jax.random.uniform(k5, (output_size, hidden_dim), jnp.float32, -bound, bound)
    b_fc = jax.random.uniform(k6, (output_size,), jnp.float32, -bound, bound)
    return {"rnn": rnn_params, "fc": (w_fc, b_fc)}


# ----------------------------------------------------------------------------
# Pure-JAX reference (mirrors torch.nn.RNN + Linear semantics) for validation
# ----------------------------------------------------------------------------
def reference_forward(params, x_btf):
    x = jnp.transpose(x_btf, (1, 0, 2)).astype(jnp.float32)  # (T, B, I)
    T, B, _ = x.shape
    h_finals = []
    for (w_ih, w_hh, b_ih, b_hh) in params["rnn"]:
        H = w_hh.shape[0]
        h = jnp.zeros((B, H), jnp.float32)
        outs = []
        for t in range(T):
            h = jnp.tanh(x[t] @ w_ih.T + b_ih + h @ w_hh.T + b_hh)
            outs.append(h)
        x = jnp.stack(outs, axis=0)
        h_finals.append(h)
    hidden = jnp.stack(h_finals, axis=0)
    w_fc, b_fc = params["fc"]
    out = x @ w_fc.T + b_fc
    return jnp.transpose(out, (1, 0, 2)), hidden


if __name__ == "__main__":
    # Small shapes consistent with the module's forward (Lorenz: 3-dim state).
    B, T = 8, 8
    input_size, hidden_dim, output_size, n_layers = 3, 32, 3, 2

    key = jax.random.PRNGKey(0)
    key, kx, kp = jax.random.split(key, 3)
    x = jax.random.normal(kx, (B, T, input_size), jnp.float32)
    params = init_params(kp, input_size, hidden_dim, output_size, n_layers)

    # One-time canonical packing of parameters (outside the jitted forward).
    wslab, meta = prepare_params(params, input_size, hidden_dim, output_size)
    model_forward = make_model_forward(meta, n_layers, hidden_dim, output_size)

    out, hidden = model_forward(wslab, x)
    out = jax.block_until_ready(out)
    hidden = jax.block_until_ready(hidden)

    assert out.shape == (B, T, output_size)
    assert hidden.shape == (n_layers, B, hidden_dim)

    ref_out, ref_hidden = reference_forward(params, x)
    assert jnp.allclose(out, ref_out, rtol=2e-3, atol=2e-3), "output mismatch"
    assert jnp.allclose(hidden, ref_hidden, rtol=2e-3, atol=2e-3), "hidden mismatch"

    print("KERNEL_OK")
</pallas_src>

<mosaic_0001>
module attributes {stable_mosaic.version = 11 : i64} {
  func.func @kernel(%arg0: memref<64x8xf32, #tpu.memory_space<vmem>>, %arg1: memref<544x128xf32, #tpu.memory_space<vmem>>, %arg2: memref<64x128xf32, #tpu.memory_space<vmem>>, %arg3: memref<16x128xf32, #tpu.memory_space<vmem>>) attributes {dimension_semantics = [], scalar_prefetch = 0 : i64, scratch_operands = 0 : i64, tpu.core_type = #tpu.core_type<tc>} {
    %c0 = arith.constant 0 : index
    %c0_0 = arith.constant 0 : index
    %0 = vector.load %arg0[%c0, %c0_0] : memref<64x8xf32, #tpu.memory_space<vmem>>, vector<64x8xf32>
    %c0_1 = arith.constant 0 : index
    %c0_2 = arith.constant 0 : index
    %1 = vector.load %arg1[%c0_1, %c0_2] : memref<544x128xf32, #tpu.memory_space<vmem>>, vector<8x128xf32>
    %c8 = arith.constant 8 : index
    %c0_3 = arith.constant 0 : index
    %2 = vector.load %arg1[%c8, %c0_3] : memref<544x128xf32, #tpu.memory_space<vmem>>, vector<128x128xf32>
    %c136 = arith.constant 136 : index
    %c0_4 = arith.constant 0 : index
    %3 = vector.load %arg1[%c136, %c0_4] : memref<544x128xf32, #tpu.memory_space<vmem>>, vector<1x128xf32>
    %cst = arith.constant dense<0.000000e+00> : vector<64x128xf32>
    %4 = tpu.matmul %0, %1, %cst {dimension_numbers = #tpu.dot_dimension_numbers<[1], [0], [0], [1], [0, 0, 1, 1], [], []>} : vector<64x8xf32>, vector<8x128xf32>, vector<64x128xf32> -> vector<64x128xf32>
    %5 = vector.broadcast %3 : vector<1x128xf32> to vector<64x128xf32>
    %6 = arith.addf %4, %5 : vector<64x128xf32>
    %7 = vector.extract_strided_slice %6 {offsets = [0, 0], sizes = [8, 128], strides = [1, 1]} : vector<64x128xf32> to vector<8x128xf32>
    %8 = math.tanh %7 : vector<8x128xf32>
    %9 = vector.extract_strided_slice %6 {offsets = [8, 0], sizes = [8, 128], strides = [1, 1]} : vector<64x128xf32> to vector<8x128xf32>
    %cst_5 = arith.constant dense<0.000000e+00> : vector<8x128xf32>
    %10 = tpu.matmul %8, %2, %cst_5 {dimension_numbers = #tpu.dot_dimension_numbers<[1], [0], [0], [1], [0, 0, 1, 1], [], []>} : vector<8x128xf32>, vector<128x128xf32>, vector<8x128xf32> -> vector<8x128xf32>
    %11 = arith.addf %9, %10 : vector<8x128xf32>
    %12 = math.tanh %11 : vector<8x128xf32>
    %13 = vector.extract_strided_slice %6 {offsets = [16, 0], sizes = [8, 128], strides = [1, 1]} : vector<64x128xf32> to vector<8x128xf32>
    %cst_6 = arith.constant dense<0.000000e+00> : vector<8x128xf32>
    %14 = tpu.matmul %12, %2, %cst_6 {dimension_numbers = #tpu.dot_dimension_numbers<[1], [0], [0], [1], [0, 0, 1, 1], [], []>} : vector<8x128xf32>, vector<128x128xf32>, vector<8x128xf32> -> vector<8x128xf32>
    %15 = arith.addf %13, %14 : vector<8x128xf32>
    %16 = math.tanh %15 : vector<8x128xf32>
    %17 = vector.extract_strided_slice %6 {offsets = [24, 0], sizes = [8, 128], strides = [1, 1]} : vector<64x128xf32> to vector<8x128xf32>
    %cst_7 = arith.constant dense<0.000000e+00> : vector<8x128xf32>
    %18 = tpu.matmul %16, %2, %cst_7 {dimension_numbers = #tpu.dot_dimension_numbers<[1], [0], [0], [1], [0, 0, 1, 1], [], []>} : vector<8x128xf32>, vector<128x128xf32>, vector<8x128xf32> -> vector<8x128xf32>
    %19 = arith.addf %17, %18 : vector<8x128xf32>
    %20 = math.tanh %19 : vector<8x128xf32>
    %21 = vector.extract_strided_slice %6 {offsets = [32, 0], sizes = [8, 128], strides = [1, 1]} : vector<64x128xf32> to vector<8x128xf32>
    %cst_8 = arith.constant dense<0.000000e+00> : vector<8x128xf32>
    %22 = tpu.matmul %20, %2, %cst_8 {dimension_numbers = #tpu.dot_dimension_numbers<[1], [0], [0], [1], [0, 0, 1, 1], [], []>} : vector<8x128xf32>, vector<128x128xf32>, vector<8x128xf32> -> vector<8x128xf32>
    %23 = arith.addf %21, %22 : vector<8x128xf32>
    %24 = math.tanh %23 : vector<8x128xf32>
    %25 = vector.extract_strided_slice %6 {offsets = [40, 0], sizes = [8, 128], strides = [1, 1]} : vector<64x128xf32> to vector<8x128xf32>
    %cst_9 = arith.constant dense<0.000000e+00> : vector<8x128xf32>
    %26 = tpu.matmul %24, %2, %cst_9 {dimension_numbers = #tpu.dot_dimension_numbers<[1], [0], [0], [1], [0, 0, 1, 1], [], []>} : vector<8x128xf32>, vector<128x128xf32>, vector<8x128xf32> -> vector<8x128xf32>
    %27 = arith.addf %25, %26 : vector<8x128xf32>
    %28 = math.tanh %27 : vector<8x128xf32>
    %29 = vector.extract_strided_slice %6 {offsets = [48, 0], sizes = [8, 128], strides = [1, 1]} : vector<64x128xf32> to vector<8x128xf32>
    %cst_10 = arith.constant dense<0.000000e+00> : vector<8x128xf32>
    %30 = tpu.matmul %28, %2, %cst_10 {dimension_numbers = #tpu.dot_dimension_numbers<[1], [0], [0], [1], [0, 0, 1, 1], [], []>} : vector<8x128xf32>, vector<128x128xf32>, vector<8x128xf32> -> vector<8x128xf32>
    %31 = arith.addf %29, %30 : vector<8x128xf32>
    %32 = math.tanh %31 : vector<8x128xf32>
    %33 = vector.extract_strided_slice %6 {offsets = [56, 0], sizes = [8, 128], strides = [1, 1]} : vector<64x128xf32> to vector<8x128xf32>
    %cst_11 = arith.constant dense<0.000000e+00> : vector<8x128xf32>
    %34 = tpu.matmul %32, %2, %cst_11 {dimension_numbers = #tpu.dot_dimension_numbers<[1], [0], [0], [1], [0, 0, 1, 1], [], []>} : vector<8x128xf32>, vector<128x128xf32>, vector<8x128xf32> -> vector<8x128xf32>
    %35 = arith.addf %33, %34 : vector<8x128xf32>
    %36 = math.tanh %35 : vector<8x128xf32>
    %c0_12 = arith.constant 0 : index
    %c0_13 = arith.constant 0 : index
    %37 = vector.load %arg3[%c0_12, %c0_13] : memref<16x128xf32, #tpu.memory_space<vmem>>, vector<8x128xf32>
    tpu.vector_store %arg3[%c0_12, %c0_13], %36 {strides = array<i32>} : memref<16x128xf32, #tpu.memory_space<vmem>>, vector<8x128xf32>,
    %38 = tpu.concatenate %8, %12, %16, %20, %24, %28, %32, %36 in 0 : vector<8x128xf32>, vector<8x128xf32>, vector<8x128xf32>, vector<8x128xf32>, vector<8x128xf32>, vector<8x128xf32>, vector<8x128xf32>, vector<8x128xf32> -> vector<64x128xf32>
    %c144 = arith.constant 144 : index
    %c0_14 = arith.constant 0 : index
    %39 = vector.load %arg1[%c144, %c0_14] : memref<544x128xf32, #tpu.memory_space<vmem>>, vector<128x128xf32>
    %c272 = arith.constant 272 : index
    %c0_15 = arith.constant 0 : index
    %40 = vector.load %arg1[%c272, %c0_15] : memref<544x128xf32, #tpu.memory_space<vmem>>, vector<128x128xf32>
    %c400 = arith.constant 400 : index
    %c0_16 = arith.constant 0 : index
    %41 = vector.load %arg1[%c400, %c0_16] : memref<544x128xf32, #tpu.memory_space<vmem>>, vector<1x128xf32>
    %cst_17 = arith.constant dense<0.000000e+00> : vector<64x128xf32>
    %42 = tpu.matmul %38, %39, %cst_17 {dimension_numbers = #tpu.dot_dimension_numbers<[1], [0], [0], [1], [0, 0, 1, 1], [], []>} : vector<64x128xf32>, vector<128x128xf32>, vector<64x128xf32> -> vector<64x128xf32>
    %43 = vector.broadcast %41 : vector<1x128xf32> to vector<64x128xf32>
    %44 = arith.addf %42, %43 : vector<64x128xf32>
    %45 = vector.extract_strided_slice %44 {offsets = [0, 0], sizes = [8, 128], strides = [1, 1]} : vector<64x128xf32> to vector<8x128xf32>
    %46 = math.tanh %45 : vector<8x128xf32>
    %47 = vector.extract_strided_slice %44 {offsets = [8, 0], sizes = [8, 128], strides = [1, 1]} : vector<64x128xf32> to vector<8x128xf32>
    %cst_18 = arith.constant dense<0.000000e+00> : vector<8x128xf32>
    %48 = tpu.matmul %46, %40, %cst_18 {dimension_numbers = #tpu.dot_dimension_numbers<[1], [0], [0], [1], [0, 0, 1, 1], [], []>} : vector<8x128xf32>, vector<128x128xf32>, vector<8x128xf32> -> vector<8x128xf32>
    %49 = arith.addf %47, %48 : vector<8x128xf32>
    %50 = math.tanh %49 : vector<8x128xf32>
    %51 = vector.extract_strided_slice %44 {offsets = [16, 0], sizes = [8, 128], strides = [1, 1]} : vector<64x128xf32> to vector<8x128xf32>
    %cst_19 = arith.constant dense<0.000000e+00> : vector<8x128xf32>
    %52 = tpu.matmul %50, %40, %cst_19 {dimension_numbers = #tpu.dot_dimension_numbers<[1], [0], [0], [1], [0, 0, 1, 1], [], []>} : vector<8x128xf32>, vector<128x128xf32>, vector<8x128xf32> -> vector<8x128xf32>
    %53 = arith.addf %51, %52 : vector<8x128xf32>
    %54 = math.tanh %53 : vector<8x128xf32>
    %55 = vector.extract_strided_slice %44 {offsets = [24, 0], sizes = [8, 128], strides = [1, 1]} : vector<64x128xf32> to vector<8x128xf32>
    %cst_20 = arith.constant dense<0.000000e+00> : vector<8x128xf32>
    %56 = tpu.matmul %54, %40, %cst_20 {dimension_numbers = #tpu.dot_dimension_numbers<[1], [0], [0], [1], [0, 0, 1, 1], [], []>} : vector<8x128xf32>, vector<128x128xf32>, vector<8x128xf32> -> vector<8x128xf32>
    %57 = arith.addf %55, %56 : vector<8x128xf32>
    %58 = math.tanh %57 : vector<8x128xf32>
    %59 = vector.extract_strided_slice %44 {offsets = [32, 0], sizes = [8, 128], strides = [1, 1]} : vector<64x128xf32> to vector<8x128xf32>
    %cst_21 = arith.constant dense<0.000000e+00> : vector<8x128xf32>
    %60 = tpu.matmul %58, %40, %cst_21 {dimension_numbers = #tpu.dot_dimension_numbers<[1], [0], [0], [1], [0, 0, 1, 1], [], []>} : vector<8x128xf32>, vector<128x128xf32>, vector<8x128xf32> -> vector<8x128xf32>
    %61 = arith.addf %59, %60 : vector<8x128xf32>
    %62 = math.tanh %61 : vector<8x128xf32>
    %63 = vector.extract_strided_slice %44 {offsets = [40, 0], sizes = [8, 128], strides = [1, 1]} : vector<64x128xf32> to vector<8x128xf32>
    %cst_22 = arith.constant dense<0.000000e+00> : vector<8x128xf32>
    %64 = tpu.matmul %62, %40, %cst_22 {dimension_numbers = #tpu.dot_dimension_numbers<[1], [0], [0], [1], [0, 0, 1, 1], [], []>} : vector<8x128xf32>, vector<128x128xf32>, vector<8x128xf32> -> vector<8x128xf32>
    %65 = arith.addf %63, %64 : vector<8x128xf32>
    %66 = math.tanh %65 : vector<8x128xf32>
    %67 = vector.extract_strided_slice %44 {offsets = [48, 0], sizes = [8, 128], strides = [1, 1]} : vector<64x128xf32> to vector<8x128xf32>
    %cst_23 = arith.constant dense<0.000000e+00> : vector<8x128xf32>
    %68 = tpu.matmul %66, %40, %cst_23 {dimension_numbers = #tpu.dot_dimension_numbers<[1], [0], [0], [1], [0, 0, 1, 1], [], []>} : vector<8x128xf32>, vector<128x128xf32>, vector<8x128xf32> -> vector<8x128xf32>
    %69 = arith.addf %67, %68 : vector<8x128xf32>
    %70 = math.tanh %69 : vector<8x128xf32>
    %71 = vector.extract_strided_slice %44 {offsets = [56, 0], sizes = [8, 128], strides = [1, 1]} : vector<64x128xf32> to vector<8x128xf32>
    %cst_24 = arith.constant dense<0.000000e+00> : vector<8x128xf32>
    %72 = tpu.matmul %70, %40, %cst_24 {dimension_numbers = #tpu.dot_dimension_numbers<[1], [0], [0], [1], [0, 0, 1, 1], [], []>} : vector<8x128xf32>, vector<128x128xf32>, vector<8x128xf32> -> vector<8x128xf32>
    %73 = arith.addf %71, %72 : vector<8x128xf32>
    %74 = math.tanh %73 : vector<8x128xf32>
    %c8_25 = arith.constant 8 : index
    %c0_26 = arith.constant 0 : index
    %75 = vector.load %arg3[%c8_25, %c0_26] : memref<16x128xf32, #tpu.memory_space<vmem>>, vector<8x128xf32>
    tpu.vector_store %arg3[%c8_25, %c0_26], %74 {strides = array<i32>} : memref<16x128xf32, #tpu.memory_space<vmem>>, vector<8x128xf32>,
    %76 = tpu.concatenate %46, %50, %54, %58, %62, %66, %70, %74 in 0 : vector<8x128xf32>, vector<8x128xf32>, vector<8x128xf32>, vector<8x128xf32>, vector<8x128xf32>, vector<8x128xf32>, vector<8x128xf32>, vector<8x128xf32> -> vector<64x128xf32>
    %c408 = arith.constant 408 : index
    %c0_27 = arith.constant 0 : index
    %77 = vector.load %arg1[%c408, %c0_27] : memref<544x128xf32, #tpu.memory_space<vmem>>, vector<128x128xf32>
    %c536 = arith.constant 536 : index
    %c0_28 = arith.constant 0 : index
    %78 = vector.load %arg1[%c536, %c0_28] : memref<544x128xf32, #tpu.memory_space<vmem>>, vector<1x128xf32>
    %cst_29 = arith.constant dense<0.000000e+00> : vector<64x128xf32>
    %79 = tpu.matmul %76, %77, %cst_29 {dimension_numbers = #tpu.dot_dimension_numbers<[1], [0], [0], [1], [0, 0, 1, 1], [], []>} : vector<64x128xf32>, vector<128x128xf32>, vector<64x128xf32> -> vector<64x128xf32>
    %80 = vector.broadcast %78 : vector<1x128xf32> to vector<64x128xf32>
    %81 = arith.addf %79, %80 : vector<64x128xf32>
    %c0_30 = arith.constant 0 : index
    %c0_31 = arith.constant 0 : index
    %82 = vector.load %arg2[%c0_30, %c0_31] : memref<64x128xf32, #tpu.memory_space<vmem>>, vector<64x128xf32>
    tpu.vector_store %arg2[%c0_30, %c0_31], %81 {strides = array<i32>} : memref<64x128xf32, #tpu.memory_space<vmem>>, vector<64x128xf32>,
    return
  }
}

</mosaic_0001>

<llo_original>
// kernel: forward.1
$region0: #{forward.1}
  #allocation0 [shape = 'u32[]', space=smem, size = 0x4, offset = 0x4, fixed_abs, tag = 'smem constant byte address 0x4 - core index']
  #allocation1 [shape = 'u32[144,128]{1,0:T(1,128)}', space=vmem, size = 0x12000, scoped, tag = 'internal scratch']
  %s0 = inlined_call_operand.vmem [shape: f32[64,8], index: 0, kind: input, shape index: {}]
  %s1 = inlined_call_operand.hbm [shape: f32[544,128], index: 1, kind: input, shape index: {}]
  %s2 = inlined_call_operand.vmem [shape: f32[64,128], index: 2, kind: output, shape index: {0}]
  %s3 = inlined_call_operand.hbm [shape: f32[16,128], index: 3, kind: output, shape index: {1}]
  %4 = xla_tuple %s2, %s3
  %s5 = sld [smem:[#allocation0]]
  $region30: #{forward.1} parent=0
    _
  %s7 = ssub.s32 1, %s5
  %s8 = scalar_select 0, %s7, %s5
  $region1: #{forward.1} parent=0
    #allocation2 [shape = 'u8[278528]{0}', space=vmem, size = 0x44000, scoped, tag = 'input window, operand 1, single buffered']
    #allocation3 [shape = 's32[1]{0}', space=sflag, size = 0x4, scoped, tag = 'scoped memory for forward.1']
    #allocation4 [shape = 's32[1]{0}', space=sflag, size = 0x4, scoped, tag = 'scoped memory for forward.1']
    #allocation5 [shape = 'u8[8192]{0}', space=vmem, size = 0x2000, scoped, tag = 'output window, operand 1, single buffered']
    %9 = vsyncpa [#allocation3], 0
    %10 = vsyncpa [#allocation4], 0
    // Predicated region
    $region2: #{forward.1} parent=1 // pred_check
      _
    $region3: #{forward.1} parent=1 // pred_check_branch
      %12 = sbr.rel (0) target = $region5
    $region4: #{forward.1} parent=1 // pred_region
      _
    $region5: #{forward.1} parent=1 // pred_fallthru
      _
    // Predicated region
    $region6: #{forward.1} parent=1 // pred_check
      _
    $region7: #{forward.1} parent=1 // pred_check_branch
      %14 = sbr.rel (0) target = $region9
    $region8: #{forward.1} parent=1 // pred_region
      %s16 = ssub.s32 8704, 8704
      %17 = vsyncadd [#allocation3], %s16
      %s18 = sshll.u32 [#allocation2], 4
      %s19 = int_to_ptr.vmem [resolvable:$true] %s18
      %24 = dma.hbm_to_vmem [thread:$0]  %s1, 8704, %s19, [#allocation3], 128, 128, 8
    $region9: #{forward.1} parent=1 // pred_fallthru
      _
    // Predicated region
    $region10: #{forward.1} parent=1 // pred_check
      _
    $region11: #{forward.1} parent=1 // pred_check_branch
      %26 = sbr.rel (0) target = $region13
    $region12: #{forward.1} parent=1 // pred_region
      %27 = dma.done [#allocation3], 8704
    $region13: #{forward.1} parent=1 // pred_fallthru
      _
    %v28 = vld [vmem:[%s0] sm:$0xff]
    %v29 = vld [vmem:[%s0 + $0x8] sm:$0xff]
    %v30 = vld [vmem:[%s0 + $0x10] sm:$0xff]
    %v31 = vld [vmem:[%s0 + $0x18] sm:$0xff]
    %v32 = vld [vmem:[%s0 + $0x20] sm:$0xff]
    %v33 = vld [vmem:[%s0 + $0x28] sm:$0xff]
    %v34 = vld [vmem:[%s0 + $0x30] sm:$0xff]
    %v35 = vld [vmem:[%s0 + $0x38] sm:$0xff]
    %v36 = vld [vmem:[#allocation2] sm:$0xff]
    %v37 = vld [vmem:[#allocation2 + $0x8] sm:$0xff]
    %v38 = vld [vmem:[#allocation2 + $0x10] sm:$0xff]
    %v39 = vld [vmem:[#allocation2 + $0x18] sm:$0xff]
    %v40 = vld [vmem:[#allocation2 + $0x20] sm:$0xff]
    %v41 = vld [vmem:[#allocation2 + $0x28] sm:$0xff]
    %v42 = vld [vmem:[#allocation2 + $0x30] sm:$0xff]
    %v43 = vld [vmem:[#allocation2 + $0x38] sm:$0xff]
    %v44 = vld [vmem:[#allocation2 + $0x40] sm:$0xff]
    %v45 = vld [vmem:[#allocation2 + $0x48] sm:$0xff]
    %v46 = vld [vmem:[#allocation2 + $0x50] sm:$0xff]
    %v47 = vld [vmem:[#allocation2 + $0x58] sm:$0xff]
    %v48 = vld [vmem:[#allocation2 + $0x60] sm:$0xff]
    %v49 = vld [vmem:[#allocation2 + $0x68] sm:$0xff]
    %v50 = vld [vmem:[#allocation2 + $0x70] sm:$0xff]
    %v51 = vld [vmem:[#allocation2 + $0x78] sm:$0xff]
    %v52 = vld [vmem:[#allocation2 + $0x80] sm:$0xff]
    %v53 = vld [vmem:[#allocation2 + $0x88] sm:$0x1]
    %v54 = vlaneseq
    %v55 = vshrl.u32 %v54, 7
    %v56 = vsub.s32 0, %v55
    %v57 = vrot.slane %v53, %v56
    %vm58 = vcmask 64512
    %v60 = vsel %vm58, %v28, 0
    %v63 = vsel %vm58, %v29, 0
    %v66 = vsel %vm58, %v30, 0
    %v69 = vsel %vm58, %v31, 0
    %v72 = vsel %vm58, %v32, 0
    %v75 = vsel %vm58, %v33, 0
    %v78 = vsel %vm58, %v34, 0
    %v81 = vsel %vm58, %v35, 0
    %83 = vmatprep.subr.mxu0 0.0
    %84 = vmatpush1.msra.mxu0 0.0
    %85 = vmatprep.subr.mxu0 0.0
    %86 = vmatpush1.msra.mxu0 0.0
    %87 = vmatprep.subr.mxu0 0.0
    %88 = vmatpush1.msra.mxu0 0.0
    %89 = vmatprep.subr.mxu0 0.0
    %90 = vmatpush1.msra.mxu0 0.0
    %91 = vmatprep.subr.mxu0 0.0
    %92 = vmatpush1.msra.mxu0 0.0
    %93 = vmatprep.subr.mxu0 0.0
    %94 = vmatpush1.msra.mxu0 0.0
    %95 = vmatprep.subr.mxu0 0.0
    %96 = vmatpush1.msra.mxu0 0.0
    %97 = vmatprep.subr.mxu0 0.0
    %98 = vmatpush1.msra.mxu0 0.0
    %99 = vmatprep.subr.mxu0 0.0
    %100 = vmatpush1.msra.mxu0 0.0
    %101 = vmatprep.subr.mxu0 0.0
    %102 = vmatpush1.msra.mxu0 0.0
    %103 = vmatprep.subr.mxu0 0.0
    %104 = vmatpush1.msra.mxu0 0.0
    %105 = vmatprep.subr.mxu0 0.0
    %106 = vmatpush1.msra.mxu0 0.0
    %107 = vmatprep.subr.mxu0 0.0
    %108 = vmatpush1.msra.mxu0 0.0
    %109 = vmatprep.subr.mxu0 0.0
    %110 = vmatpush1.msra.mxu0 0.0
    %111 = vmatprep.subr.mxu0 0.0
    %112 = vmatpush1.msra.mxu0 0.0
    %113 = vmatprep.subr.mxu0 0.0
    %114 = vmatpush1.msra.mxu0 %v36
    %115 = vmatprep.subr.mxu0 0.0
    %116 = vmatpush2.msra.mxu0 0.0
    %117 = vmatprep.subr.mxu0 0.0
    %118 = vmatpush2.msra.mxu0 0.0
    %119 = vmatprep.subr.mxu0 0.0
    %120 = vmatpush2.msra.mxu0 0.0
    %121 = vmatprep.subr.mxu0 0.0
    %122 = vmatpush2.msra.mxu0 0.0
    %123 = vmatprep.subr.mxu0 0.0
    %124 = vmatpush2.msra.mxu0 0.0
    %125 = vmatprep.subr.mxu0 0.0
    %126 = vmatpush2.msra.mxu0 0.0
    %127 = vmatprep.subr.mxu0 0.0
    %128 = vmatpush2.msra.mxu0 0.0
    %129 = vmatprep.subr.mxu0 0.0
    %130 = vmatpush2.msra.mxu0 0.0
    %131 = vmatprep.subr.mxu0 0.0
    %132 = vmatpush2.msra.mxu0 0.0
    %133 = vmatprep.subr.mxu0 0.0
    %134 = vmatpush2.msra.mxu0 0.0
    %135 = vmatprep.subr.mxu0 0.0
    %136 = vmatpush2.msra.mxu0 0.0
    %137 = vmatprep.subr.mxu0 0.0
    %138 = vmatpush2.msra.mxu0 0.0
    %139 = vmatprep.subr.mxu0 0.0
    %140 = vmatpush2.msra.mxu0 0.0
    %141 = vmatprep.subr.mxu0 0.0
    %142 = vmatpush2.msra.mxu0 0.0
    %143 = vmatprep.subr.mxu0 0.0
    %144 = vmatpush2.msra.mxu0 0.0
    %145 = vmatprep.subr.mxu0 0.0
    %146 = vmatpush2.msra.mxu0 0.0
    %147 = vmatprep.mubr.f32.mxu0 0.0
    %148 = vmatmul.mubr.f32.gmra.mxu0 %v60
    %v149 = vpop.f32.mrf.mxu0
    %v150 = vadd.f32 %v57, %v149
    %v151 = vpop.f32.mrf.mxu0
    %152 = vmatprep.mubr.f32.mxu0 0.0
    %153 = vmatmul.mubr.f32.gmra.mxu0 %v63
    %v154 = vpop.f32.mrf.mxu0
    %v155 = vadd.f32 %v57, %v154
    %v156 = vpop.f32.mrf.mxu0
    %157 = vmatprep.mubr.f32.mxu0 0.0
    %158 = vmatmul.mubr.f32.gmra.mxu0 %v66
    %v159 = vpop.f32.mrf.mxu0
    %v160 = vadd.f32 %v57, %v159
    %v161 = vpop.f32.mrf.mxu0
    %162 = vmatprep.mubr.f32.mxu0 0.0
    %163 = vmatmul.mubr.f32.gmra.mxu0 %v69
    %v164 = vpop.f32.mrf.mxu0
    %v165 = vadd.f32 %v57, %v164
    %v166 = vpop.f32.mrf.mxu0
    %167 = vmatprep.mubr.f32.mxu0 0.0
    %168 = vmatmul.mubr.f32.gmra.mxu0 %v72
    %v169 = vpop.f32.mrf.mxu0
    %v170 = vadd.f32 %v57, %v169
    %v171 = vpop.f32.mrf.mxu0
    %172 = vmatprep.mubr.f32.mxu0 0.0
    %173 = vmatmul.mubr.f32.gmra.mxu0 %v75
    %v174 = vpop.f32.mrf.mxu0
    %v175 = vadd.f32 %v57, %v174
    %v176 = vpop.f32.mrf.mxu0
    %177 = vmatprep.mubr.f32.mxu0 0.0
    %178 = vmatmul.mubr.f32.gmra.mxu0 %v78
    %v179 = vpop.f32.mrf.mxu0
    %v180 = vadd.f32 %v57, %v179
    %v181 = vpop.f32.mrf.mxu0
    %182 = vmatprep.mubr.f32.mxu0 0.0
    %183 = vmatmul.mubr.f32.gmra.mxu0 %v81
    %v184 = vpop.f32.mrf.mxu0
    %v185 = vadd.f32 %v57, %v184
    %v186 = vpop.f32.mrf.mxu0
    %187 = vdwg.mxu0
    %v188 = vtanh.pop %v150
    %189 = vmatprep.subr.mxu0 0.0
    %190 = vmatpush1.msra.mxu0 %v52
    %191 = vmatprep.subr.mxu0 0.0
    %192 = vmatpush1.msra.mxu0 %v51
    %193 = vmatprep.subr.mxu0 0.0
    %194 = vmatpush1.msra.mxu0 %v50
    %195 = vmatprep.subr.mxu0 0.0
    %196 = vmatpush1.msra.mxu0 %v49
    %197 = vmatprep.subr.mxu0 0.0
    %198 = vmatpush1.msra.mxu0 %v48
    %199 = vmatprep.subr.mxu0 0.0
    %200 = vmatpush1.msra.mxu0 %v47
    %201 = vmatprep.subr.mxu0 0.0
    %202 = vmatpush1.msra.mxu0 %v46
    %203 = vmatprep.subr.mxu0 0.0
    %204 = vmatpush1.msra.mxu0 %v45
    %205 = vmatprep.subr.mxu0 0.0
    %206 = vmatpush1.msra.mxu0 %v44
    %207 = vmatprep.subr.mxu0 0.0
    %208 = vmatpush1.msra.mxu0 %v43
    %209 = vmatprep.subr.mxu0 0.0
    %210 = vmatpush1.msra.mxu0 %v42
    %211 = vmatprep.subr.mxu0 0.0
    %212 = vmatpush1.msra.mxu0 %v41
    %213 = vmatprep.subr.mxu0 0.0
    %214 = vmatpush1.msra.mxu0 %v40
    %215 = vmatprep.subr.mxu0 0.0
    %216 = vmatpush1.msra.mxu0 %v39
    %217 = vmatprep.subr.mxu0 0.0
    %218 = vmatpush1.msra.mxu0 %v38
    %219 = vmatprep.subr.mxu0 0.0
    %220 = vmatpush1.msra.mxu0 %v37
    %221 = vmatprep.subr.mxu0 0.0
    %222 = vmatpush2.msra.mxu0 0.0
    %223 = vmatprep.subr.mxu0 0.0
    %224 = vmatpush2.msra.mxu0 0.0
    %225 = vmatprep.subr.mxu0 0.0
    %226 = vmatpush2.msra.mxu0 0.0
    %227 = vmatprep.subr.mxu0 0.0
    %228 = vmatpush2.msra.mxu0 0.0
    %229 = vmatprep.subr.mxu0 0.0
    %230 = vmatpush2.msra.mxu0 0.0
    %231 = vmatprep.subr.mxu0 0.0
    %232 = vmatpush2.msra.mxu0 0.0
    %233 = vmatprep.subr.mxu0 0.0
    %234 = vmatpush2.msra.mxu0 0.0
    %235 = vmatprep.subr.mxu0 0.0
    %236 = vmatpush2.msra.mxu0 0.0
    %237 = vmatprep.subr.mxu0 0.0
    %238 = vmatpush2.msra.mxu0 0.0
    %239 = vmatprep.subr.mxu0 0.0
    %240 = vmatpush2.msra.mxu0 0.0
    %241 = vmatprep.subr.mxu0 0.0
    %242 = vmatpush2.msra.mxu0 0.0
    %243 = vmatprep.subr.mxu0 0.0
    %244 = vmatpush2.msra.mxu0 0.0
    %245 = vmatprep.subr.mxu0 0.0
    %246 = vmatpush2.msra.mxu0 0.0
    %247 = vmatprep.subr.mxu0 0.0
    %248 = vmatpush2.msra.mxu0 0.0
    %249 = vmatprep.subr.mxu0 0.0
    %250 = vmatpush2.msra.mxu0 0.0
    %251 = vmatprep.subr.mxu0 0.0
    %252 = vmatpush2.msra.mxu0 0.0
    %253 = vmatprep.mubr.f32.mxu0 0.0
    %254 = vmatmul.mubr.f32.gmra.mxu0 %v188
    %v255 = vpop.f32.mrf.mxu0
    %v256 = vadd.f32 0.0, %v255
    %v257 = vpop.f32.mrf.mxu0
    %258 = vdwg.mxu0
    %v259 = vadd.f32 %v155, %v256
    %v260 = vtanh.pop %v259
    %261 = vmatprep.subr.mxu0 0.0
    %262 = vmatpush1.msra.mxu0 %v52
    %263 = vmatprep.subr.mxu0 0.0
    %264 = vmatpush1.msra.mxu0 %v51
    %265 = vmatprep.subr.mxu0 0.0
    %266 = vmatpush1.msra.mxu0 %v50
    %267 = vmatprep.subr.mxu0 0.0
    %268 = vmatpush1.msra.mxu0 %v49
    %269 = vmatprep.subr.mxu0 0.0
    %270 = vmatpush1.msra.mxu0 %v48
    %271 = vmatprep.subr.mxu0 0.0
    %272 = vmatpush1.msra.mxu0 %v47
    %273 = vmatprep.subr.mxu0 0.0
    %274 = vmatpush1.msra.mxu0 %v46
    %275 = vmatprep.subr.mxu0 0.0
    %276 = vmatpush1.msra.mxu0 %v45
    %277 = vmatprep.subr.mxu0 0.0
    %278 = vmatpush1.msra.mxu0 %v44
    %279 = vmatprep.subr.mxu0 0.0
    %280 = vmatpush1.msra.mxu0 %v43
    %281 = vmatprep.subr.mxu0 0.0
    %282 = vmatpush1.msra.mxu0 %v42
    %283 = vmatprep.subr.mxu0 0.0
    %284 = vmatpush1.msra.mxu0 %v41
    %285 = vmatprep.subr.mxu0 0.0
    %286 = vmatpush1.msra.mxu0 %v40
    %287 = vmatprep.subr.mxu0 0.0
    %288 = vmatpush1.msra.mxu0 %v39
    %289 = vmatprep.subr.mxu0 0.0
    %290 = vmatpush1.msra.mxu0 %v38
    %291 = vmatprep.subr.mxu0 0.0
    %292 = vmatpush1.msra.mxu0 %v37
    %293 = vmatprep.subr.mxu0 0.0
    %294 = vmatpush2.msra.mxu0 0.0
    %295 = vmatprep.subr.mxu0 0.0
    %296 = vmatpush2.msra.mxu0 0.0
    %297 = vmatprep.subr.mxu0 0.0
    %298 = vmatpush2.msra.mxu0 0.0
    %299 = vmatprep.subr.mxu0 0.0
    %300 = vmatpush2.msra.mxu0 0.0
    %301 = vmatprep.subr.mxu0 0.0
    %302 = vmatpush2.msra.mxu0 0.0
    %303 = vmatprep.subr.mxu0 0.0
    %304 = vmatpush2.msra.mxu0 0.0
    %305 = vmatprep.subr.mxu0 0.0
    %306 = vmatpush2.msra.mxu0 0.0
    %307 = vmatprep.subr.mxu0 0.0
    %308 = vmatpush2.msra.mxu0 0.0
    %309 = vmatprep.subr.mxu0 0.0
    %310 = vmatpush2.msra.mxu0 0.0
    %311 = vmatprep.subr.mxu0 0.0
    %312 = vmatpush2.msra.mxu0 0.0
    %313 = vmatprep.subr.mxu0 0.0
    %314 = vmatpush2.msra.mxu0 0.0
    %315 = vmatprep.subr.mxu0 0.0
    %316 = vmatpush2.msra.mxu0 0.0
    %317 = vmatprep.subr.mxu0 0.0
    %318 = vmatpush2.msra.mxu0 0.0
    %319 = vmatprep.subr.mxu0 0.0
    %320 = vmatpush2.msra.mxu0 0.0
    %321 = vmatprep.subr.mxu0 0.0
    %322 = vmatpush2.msra.mxu0 0.0
    %323 = vmatprep.subr.mxu0 0.0
    %324 = vmatpush2.msra.mxu0 0.0
    %325 = vmatprep.mubr.f32.mxu0 0.0
    %326 = vmatmul.mubr.f32.gmra.mxu0 %v260
    %v327 = vpop.f32.mrf.mxu0
    %v328 = vadd.f32 0.0, %v327
    %v329 = vpop.f32.mrf.mxu0
    %330 = vdwg.mxu0
    %v331 = vadd.f32 %v160, %v328
    %v332 = vtanh.pop %v331
    %333 = vmatprep.subr.mxu0 0.0
    %334 = vmatpush1.msra.mxu0 %v52
    %335 = vmatprep.subr.mxu0 0.0
    %336 = vmatpush1.msra.mxu0 %v51
    %337 = vmatprep.subr.mxu0 0.0
    %338 = vmatpush1.msra.mxu0 %v50
    %339 = vmatprep.subr.mxu0 0.0
    %340 = vmatpush1.msra.mxu0 %v49
    %341 = vmatprep.subr.mxu0 0.0
    %342 = vmatpush1.msra.mxu0 %v48
    %343 = vmatprep.subr.mxu0 0.0
    %344 = vmatpush1.msra.mxu0 %v47
    %345 = vmatprep.subr.mxu0 0.0
    %346 = vmatpush1.msra.mxu0 %v46
    %347 = vmatprep.subr.mxu0 0.0
    %348 = vmatpush1.msra.mxu0 %v45
    %349 = vmatprep.subr.mxu0 0.0
    %350 = vmatpush1.msra.mxu0 %v44
    %351 = vmatprep.subr.mxu0 0.0
    %352 = vmatpush1.msra.mxu0 %v43
    %353 = vmatprep.subr.mxu0 0.0
    %354 = vmatpush1.msra.mxu0 %v42
    %355 = vmatprep.subr.mxu0 0.0
    %356 = vmatpush1.msra.mxu0 %v41
    %357 = vmatprep.subr.mxu0 0.0
    %358 = vmatpush1.msra.mxu0 %v40
    %359 = vmatprep.subr.mxu0 0.0
    %360 = vmatpush1.msra.mxu0 %v39
    %361 = vmatprep.subr.mxu0 0.0
    %362 = vmatpush1.msra.mxu0 %v38
    %363 = vmatprep.subr.mxu0 0.0
    %364 = vmatpush1.msra.mxu0 %v37
    %365 = vmatprep.subr.mxu0 0.0
    %366 = vmatpush2.msra.mxu0 0.0
    %367 = vmatprep.subr.mxu0 0.0
    %368 = vmatpush2.msra.mxu0 0.0
    %369 = vmatprep.subr.mxu0 0.0
    %370 = vmatpush2.msra.mxu0 0.0
    %371 = vmatprep.subr.mxu0 0.0
    %372 = vmatpush2.msra.mxu0 0.0
    %373 = vmatprep.subr.mxu0 0.0
    %374 = vmatpush2.msra.mxu0 0.0
    %375 = vmatprep.subr.mxu0 0.0
    %376 = vmatpush2.msra.mxu0 0.0
    %377 = vmatprep.subr.mxu0 0.0
    %378 = vmatpush2.msra.mxu0 0.0
    %379 = vmatprep.subr.mxu0 0.0
    %380 = vmatpush2.msra.mxu0 0.0
    %381 = vmatprep.subr.mxu0 0.0
    %382 = vmatpush2.msra.mxu0 0.0
    %383 = vmatprep.subr.mxu0 0.0
    %384 = vmatpush2.msra.mxu0 0.0
    %385 = vmatprep.subr.mxu0 0.0
    %386 = vmatpush2.msra.mxu0 0.0
    %387 = vmatprep.subr.mxu0 0.0
    %388 = vmatpush2.msra.mxu0 0.0
    %389 = vmatprep.subr.mxu0 0.0
    %390 = vmatpush2.msra.mxu0 0.0
    %391 = vmatprep.subr.mxu0 0.0
    %392 = vmatpush2.msra.mxu0 0.0
    %393 = vmatprep.subr.mxu0 0.0
    %394 = vmatpush2.msra.mxu0 0.0
    %395 = vmatprep.subr.mxu0 0.0
    %396 = vmatpush2.msra.mxu0 0.0
    %397 = vmatprep.mubr.f32.mxu0 0.0
    %398 = vmatmul.mubr.f32.gmra.mxu0 %v332
    %v399 = vpop.f32.mrf.mxu0
    %v400 = vadd.f32 0.0, %v399
    %v401 = vpop.f32.mrf.mxu0
    %402 = vdwg.mxu0
    %v403 = vadd.f32 %v165, %v400
    %v404 = vtanh.pop %v403
    %405 = vmatprep.subr.mxu0 0.0
    %406 = vmatpush1.msra.mxu0 %v52
    %407 = vmatprep.subr.mxu0 0.0
    %408 = vmatpush1.msra.mxu0 %v51
    %409 = vmatprep.subr.mxu0 0.0
    %410 = vmatpush1.msra.mxu0 %v50
    %411 = vmatprep.subr.mxu0 0.0
    %412 = vmatpush1.msra.mxu0 %v49
    %413 = vmatprep.subr.mxu0 0.0
    %414 = vmatpush1.msra.mxu0 %v48
    %415 = vmatprep.subr.mxu0 0.0
    %416 = vmatpush1.msra.mxu0 %v47
    %417 = vmatprep.subr.mxu0 0.0
    %418 = vmatpush1.msra.mxu0 %v46
    %419 = vmatprep.subr.mxu0 0.0
    %420 = vmatpush1.msra.mxu0 %v45
    %421 = vmatprep.subr.mxu0 0.0
    %422 = vmatpush1.msra.mxu0 %v44
    %423 = vmatprep.subr.mxu0 0.0
    %424 = vmatpush1.msra.mxu0 %v43
    %425 = vmatprep.subr.mxu0 0.0
    %426 = vmatpush1.msra.mxu0 %v42
    %427 = vmatprep.subr.mxu0 0.0
    %428 = vmatpush1.msra.mxu0 %v41
    %429 = vmatprep.subr.mxu0 0.0
    %430 = vmatpush1.msra.mxu0 %v40
    %431 = vmatprep.subr.mxu0 0.0
    %432 = vmatpush1.msra.mxu0 %v39
    %433 = vmatprep.subr.mxu0 0.0
    %434 = vmatpush1.msra.mxu0 %v38
    %435 = vmatprep.subr.mxu0 0.0
    %436 = vmatpush1.msra.mxu0 %v37
    %437 = vmatprep.subr.mxu0 0.0
    %438 = vmatpush2.msra.mxu0 0.0
    %439 = vmatprep.subr.mxu0 0.0
    %440 = vmatpush2.msra.mxu0 0.0
    %441 = vmatprep.subr.mxu0 0.0
    %442 = vmatpush2.msra.mxu0 0.0
    %443 = vmatprep.subr.mxu0 0.0
    %444 = vmatpush2.msra.mxu0 0.0
    %445 = vmatprep.subr.mxu0 0.0
    %446 = vmatpush2.msra.mxu0 0.0
    %447 = vmatprep.subr.mxu0 0.0
    %448 = vmatpush2.msra.mxu0 0.0
    %449 = vmatprep.subr.mxu0 0.0
    %450 = vmatpush2.msra.mxu0 0.0
    %451 = vmatprep.subr.mxu0 0.0
    %452 = vmatpush2.msra.mxu0 0.0
    %453 = vmatprep.subr.mxu0 0.0
    %454 = vmatpush2.msra.mxu0 0.0
    %455 = vmatprep.subr.mxu0 0.0
    %456 = vmatpush2.msra.mxu0 0.0
    %457 = vmatprep.subr.mxu0 0.0
    %458 = vmatpush2.msra.mxu0 0.0
    %459 = vmatprep.subr.mxu0 0.0
    %460 = vmatpush2.msra.mxu0 0.0
    %461 = vmatprep.subr.mxu0 0.0
    %462 = vmatpush2.msra.mxu0 0.0
    %463 = vmatprep.subr.mxu0 0.0
    %464 = vmatpush2.msra.mxu0 0.0
    %465 = vmatprep.subr.mxu0 0.0
    %466 = vmatpush2.msra.mxu0 0.0
    %467 = vmatprep.subr.mxu0 0.0
    %468 = vmatpush2.msra.mxu0 0.0
    %469 = vmatprep.mubr.f32.mxu0 0.0
    %470 = vmatmul.mubr.f32.gmra.mxu0 %v404
    %v471 = vpop.f32.mrf.mxu0
    %v472 = vadd.f32 0.0, %v471
    %v473 = vpop.f32.mrf.mxu0
    %474 = vdwg.mxu0
    %v475 = vadd.f32 %v170, %v472
    %v476 = vtanh.pop %v475
    %477 = vmatprep.subr.mxu0 0.0
    %478 = vmatpush1.msra.mxu0 %v52
    %479 = vmatprep.subr.mxu0 0.0
    %480 = vmatpush1.msra.mxu0 %v51
    %481 = vmatprep.subr.mxu0 0.0
    %482 = vmatpush1.msra.mxu0 %v50
    %483 = vmatprep.subr.mxu0 0.0
    %484 = vmatpush1.msra.mxu0 %v49
    %485 = vmatprep.subr.mxu0 0.0
    %486 = vmatpush1.msra.mxu0 %v48
    %487 = vmatprep.subr.mxu0 0.0
    %488 = vmatpush1.msra.mxu0 %v47
    %489 = vmatprep.subr.mxu0 0.0
    %490 = vmatpush1.msra.mxu0 %v46
    %491 = vmatprep.subr.mxu0 0.0
    %492 = vmatpush1.msra.mxu0 %v45
    %493 = vmatprep.subr.mxu0 0.0
    %494 = vmatpush1.msra.mxu0 %v44
    %495 = vmatprep.subr.mxu0 0.0
    %496 = vmatpush1.msra.mxu0 %v43
    %497 = vmatprep.subr.mxu0 0.0
    %498 = vmatpush1.msra.mxu0 %v42
    %499 = vmatprep.subr.mxu0 0.0
    %500 = vmatpush1.msra.mxu0 %v41
    %501 = vmatprep.subr.mxu0 0.0
    %502 = vmatpush1.msra.mxu0 %v40
    %503 = vmatprep.subr.mxu0 0.0
    %504 = vmatpush1.msra.mxu0 %v39
    %505 = vmatprep.subr.mxu0 0.0
    %506 = vmatpush1.msra.mxu0 %v38
    %507 = vmatprep.subr.mxu0 0.0
    %508 = vmatpush1.msra.mxu0 %v37
    %509 = vmatprep.subr.mxu0 0.0
    %510 = vmatpush2.msra.mxu0 0.0
    %511 = vmatprep.subr.mxu0 0.0
    %512 = vmatpush2.msra.mxu0 0.0
    %513 = vmatprep.subr.mxu0 0.0
    %514 = vmatpush2.msra.mxu0 0.0
    %515 = vmatprep.subr.mxu0 0.0
    %516 = vmatpush2.msra.mxu0 0.0
    %517 = vmatprep.subr.mxu0 0.0
    %518 = vmatpush2.msra.mxu0 0.0
    %519 = vmatprep.subr.mxu0 0.0
    %520 = vmatpush2.msra.mxu0 0.0
    %521 = vmatprep.subr.mxu0 0.0
    %522 = vmatpush2.msra.mxu0 0.0
    %523 = vmatprep.subr.mxu0 0.0
    %524 = vmatpush2.msra.mxu0 0.0
    %525 = vmatprep.subr.mxu0 0.0
    %526 = vmatpush2.msra.mxu0 0.0
    %527 = vmatprep.subr.mxu0 0.0
    %528 = vmatpush2.msra.mxu0 0.0
    %529 = vmatprep.subr.mxu0 0.0
    %530 = vmatpush2.msra.mxu0 0.0
    %531 = vmatprep.subr.mxu0 0.0
    %532 = vmatpush2.msra.mxu0 0.0
    %533 = vmatprep.subr.mxu0 0.0
    %534 = vmatpush2.msra.mxu0 0.0
    %535 = vmatprep.subr.mxu0 0.0
    %536 = vmatpush2.msra.mxu0 0.0
    %537 = vmatprep.subr.mxu0 0.0
    %538 = vmatpush2.msra.mxu0 0.0
    %539 = vmatprep.subr.mxu0 0.0
    %540 = vmatpush2.msra.mxu0 0.0
    %541 = vmatprep.mubr.f32.mxu0 0.0
    %542 = vmatmul.mubr.f32.gmra.mxu0 %v476
    %v543 = vpop.f32.mrf.mxu0
    %v544 = vadd.f32 0.0, %v543
    %v545 = vpop.f32.mrf.mxu0
    %546 = vdwg.mxu0
    %v547 = vadd.f32 %v175, %v544
    %v548 = vtanh.pop %v547
    %549 = vmatprep.subr.mxu0 0.0
    %550 = vmatpush1.msra.mxu0 %v52
    %551 = vmatprep.subr.mxu0 0.0
    %552 = vmatpush1.msra.mxu0 %v51
    %553 = vmatprep.subr.mxu0 0.0
    %554 = vmatpush1.msra.mxu0 %v50
    %555 = vmatprep.subr.mxu0 0.0
    %556 = vmatpush1.msra.mxu0 %v49
    %557 = vmatprep.subr.mxu0 0.0
    %558 = vmatpush1.msra.mxu0 %v48
    %559 = vmatprep.subr.mxu0 0.0
    %560 = vmatpush1.msra.mxu0 %v47
    %561 = vmatprep.subr.mxu0 0.0
    %562 = vmatpush1.msra.mxu0 %v46
    %563 = vmatprep.subr.mxu0 0.0
    %564 = vmatpush1.msra.mxu0 %v45
    %565 = vmatprep.subr.mxu0 0.0
    %566 = vmatpush1.msra.mxu0 %v44
    %567 = vmatprep.subr.mxu0 0.0
    %568 = vmatpush1.msra.mxu0 %v43
    %569 = vmatprep.subr.mxu0 0.0
    %570 = vmatpush1.msra.mxu0 %v42
    %571 = vmatprep.subr.mxu0 0.0
    %572 = vmatpush1.msra.mxu0 %v41
    %573 = vmatprep.subr.mxu0 0.0
    %574 = vmatpush1.msra.mxu0 %v40
    %575 = vmatprep.subr.mxu0 0.0
    %576 = vmatpush1.msra.mxu0 %v39
    %577 = vmatprep.subr.mxu0 0.0
    %578 = vmatpush1.msra.mxu0 %v38
    %579 = vmatprep.subr.mxu0 0.0
    %580 = vmatpush1.msra.mxu0 %v37
    %581 = vmatprep.subr.mxu0 0.0
    %582 = vmatpush2.msra.mxu0 0.0
    %583 = vmatprep.subr.mxu0 0.0
    %584 = vmatpush2.msra.mxu0 0.0
    %585 = vmatprep.subr.mxu0 0.0
    %586 = vmatpush2.msra.mxu0 0.0
    %587 = vmatprep.subr.mxu0 0.0
    %588 = vmatpush2.msra.mxu0 0.0
    %589 = vmatprep.subr.mxu0 0.0
    %590 = vmatpush2.msra.mxu0 0.0
    %591 = vmatprep.subr.mxu0 0.0
    %592 = vmatpush2.msra.mxu0 0.0
    %593 = vmatprep.subr.mxu0 0.0
    %594 = vmatpush2.msra.mxu0 0.0
    %595 = vmatprep.subr.mxu0 0.0
    %596 = vmatpush2.msra.mxu0 0.0
    %597 = vmatprep.subr.mxu0 0.0
    %598 = vmatpush2.msra.mxu0 0.0
    %599 = vmatprep.subr.mxu0 0.0
    %600 = vmatpush2.msra.mxu0 0.0
    %601 = vmatprep.subr.mxu0 0.0
    %602 = vmatpush2.msra.mxu0 0.0
    %603 = vmatprep.subr.mxu0 0.0
    %604 = vmatpush2.msra.mxu0 0.0
    %605 = vmatprep.subr.mxu0 0.0
    %606 = vmatpush2.msra.mxu0 0.0
    %607 = vmatprep.subr.mxu0 0.0
    %608 = vmatpush2.msra.mxu0 0.0
    %609 = vmatprep.subr.mxu0 0.0
    %610 = vmatpush2.msra.mxu0 0.0
    %611 = vmatprep.subr.mxu0 0.0
    %612 = vmatpush2.msra.mxu0 0.0
    %613 = vmatprep.mubr.f32.mxu0 0.0
    %614 = vmatmul.mubr.f32.gmra.mxu0 %v548
    %v615 = vpop.f32.mrf.mxu0
    %v616 = vadd.f32 0.0, %v615
    %v617 = vpop.f32.mrf.mxu0
    %618 = vdwg.mxu0
    %v619 = vadd.f32 %v180, %v616
    %v620 = vtanh.pop %v619
    %621 = vmatprep.subr.mxu0 0.0
    %622 = vmatpush1.msra.mxu0 %v52
    %623 = vmatprep.subr.mxu0 0.0
    %624 = vmatpush1.msra.mxu0 %v51
    %625 = vmatprep.subr.mxu0 0.0
    %626 = vmatpush1.msra.mxu0 %v50
    %627 = vmatprep.subr.mxu0 0.0
    %628 = vmatpush1.msra.mxu0 %v49
    %629 = vmatprep.subr.mxu0 0.0
    %630 = vmatpush1.msra.mxu0 %v48
    %631 = vmatprep.subr.mxu0 0.0
    %632 = vmatpush1.msra.mxu0 %v47
    %633 = vmatprep.subr.mxu0 0.0
    %634 = vmatpush1.msra.mxu0 %v46
    %635 = vmatprep.subr.mxu0 0.0
    %636 = vmatpush1.msra.mxu0 %v45
    %637 = vmatprep.subr.mxu0 0.0
    %638 = vmatpush1.msra.mxu0 %v44
    %639 = vmatprep.subr.mxu0 0.0
    %640 = vmatpush1.msra.mxu0 %v43
    %641 = vmatprep.subr.mxu0 0.0
    %642 = vmatpush1.msra.mxu0 %v42
    %643 = vmatprep.subr.mxu0 0.0
    %644 = vmatpush1.msra.mxu0 %v41
    %645 = vmatprep.subr.mxu0 0.0
    %646 = vmatpush1.msra.mxu0 %v40
    %647 = vmatprep.subr.mxu0 0.0
    %648 = vmatpush1.msra.mxu0 %v39
    %649 = vmatprep.subr.mxu0 0.0
    %650 = vmatpush1.msra.mxu0 %v38
    %651 = vmatprep.subr.mxu0 0.0
    %652 = vmatpush1.msra.mxu0 %v37
    %653 = vmatprep.subr.mxu0 0.0
    %654 = vmatpush2.msra.mxu0 0.0
    %655 = vmatprep.subr.mxu0 0.0
    %656 = vmatpush2.msra.mxu0 0.0
    %657 = vmatprep.subr.mxu0 0.0
    %658 = vmatpush2.msra.mxu0 0.0
    %659 = vmatprep.subr.mxu0 0.0
    %660 = vmatpush2.msra.mxu0 0.0
    %661 = vmatprep.subr.mxu0 0.0
    %662 = vmatpush2.msra.mxu0 0.0
    %663 = vmatprep.subr.mxu0 0.0
    %664 = vmatpush2.msra.mxu0 0.0
    %665 = vmatprep.subr.mxu0 0.0
    %666 = vmatpush2.msra.mxu0 0.0
    %667 = vmatprep.subr.mxu0 0.0
    %668 = vmatpush2.msra.mxu0 0.0
    %669 = vmatprep.subr.mxu0 0.0
    %670 = vmatpush2.msra.mxu0 0.0
    %671 = vmatprep.subr.mxu0 0.0
    %672 = vmatpush2.msra.mxu0 0.0
    %673 = vmatprep.subr.mxu0 0.0
    %674 = vmatpush2.msra.mxu0 0.0
    %675 = vmatprep.subr.mxu0 0.0
    %676 = vmatpush2.msra.mxu0 0.0
    %677 = vmatprep.subr.mxu0 0.0
    %678 = vmatpush2.msra.mxu0 0.0
    %679 = vmatprep.subr.mxu0 0.0
    %680 = vmatpush2.msra.mxu0 0.0
    %681 = vmatprep.subr.mxu0 0.0
    %682 = vmatpush2.msra.mxu0 0.0
    %683 = vmatprep.subr.mxu0 0.0
    %684 = vmatpush2.msra.mxu0 0.0
    %685 = vmatprep.mubr.f32.mxu0 0.0
    %686 = vmatmul.mubr.f32.gmra.mxu0 %v620
    %v687 = vpop.f32.mrf.mxu0
    %v688 = vadd.f32 0.0, %v687
    %v689 = vpop.f32.mrf.mxu0
    %690 = vdwg.mxu0
    %v691 = vadd.f32 %v185, %v688
    %v692 = vtanh.pop %v691
    %693 = vst [vmem:[#allocation5] sm:$0xff] %v692
    %v694 = vld [vmem:[#allocation2 + $0x90] sm:$0xff]
    %v695 = vld [vmem:[#allocation2 + $0x98] sm:$0xff]
    %v696 = vld [vmem:[#allocation2 + $0xa0] sm:$0xff]
    %v697 = vld [vmem:[#allocation2 + $0xa8] sm:$0xff]
    %v698 = vld [vmem:[#allocation2 + $0xb0] sm:$0xff]
    %v699 = vld [vmem:[#allocation2 + $0xb8] sm:$0xff]
    %v700 = vld [vmem:[#allocation2 + $0xc0] sm:$0xff]
    %v701 = vld [vmem:[#allocation2 + $0xc8] sm:$0xff]
    %v702 = vld [vmem:[#allocation2 + $0xd0] sm:$0xff]
    %v703 = vld [vmem:[#allocation2 + $0xd8] sm:$0xff]
    %v704 = vld [vmem:[#allocation2 + $0xe0] sm:$0xff]
    %v705 = vld [vmem:[#allocation2 + $0xe8] sm:$0xff]
    %v706 = vld [vmem:[#allocation2 + $0xf0] sm:$0xff]
    %v707 = vld [vmem:[#allocation2 + $0xf8] sm:$0xff]
    %v708 = vld [vmem:[#allocation2 + $0x100] sm:$0xff]
    %v709 = vld [vmem:[#allocation2 + $0x108] sm:$0xff]
    %v710 = vld [vmem:[#allocation2 + $0x110] sm:$0xff]
    %v711 = vld [vmem:[#allocation2 + $0x118] sm:$0xff]
    %v712 = vld [vmem:[#allocation2 + $0x120] sm:$0xff]
    %v713 = vld [vmem:[#allocation2 + $0x128] sm:$0xff]
    %v714 = vld [vmem:[#allocation2 + $0x130] sm:$0xff]
    %v715 = vld [vmem:[#allocation2 + $0x138] sm:$0xff]
    %v716 = vld [vmem:[#allocation2 + $0x140] sm:$0xff]
    %v717 = vld [vmem:[#allocation2 + $0x148] sm:$0xff]
    %v718 = vld [vmem:[#allocation2 + $0x150] sm:$0xff]
    %v719 = vld [vmem:[#allocation2 + $0x158] sm:$0xff]
    %v720 = vld [vmem:[#allocation2 + $0x160] sm:$0xff]
    %v721 = vld [vmem:[#allocation2 + $0x168] sm:$0xff]
    %v722 = vld [vmem:[#allocation2 + $0x170] sm:$0xff]
    %v723 = vld [vmem:[#allocation2 + $0x178] sm:$0xff]
    %v724 = vld [vmem:[#allocation2 + $0x180] sm:$0xff]
    %v725 = vld [vmem:[#allocation2 + $0x188] sm:$0xff]
    %v726 = vld [vmem:[#allocation2 + $0x190] sm:$0x1]
    %v727 = vlaneseq
    %v728 = vshrl.u32 %v727, 7
    %v729 = vsub.s32 0, %v728
    %v730 = vrot.slane %v726, %v729
    %731 = vmatprep.subr.mxu0 0.0
    %732 = vmatpush1.msra.mxu0 %v709
    %733 = vmatprep.subr.mxu0 0.0
    %734 = vmatpush1.msra.mxu0 %v708
    %735 = vmatprep.subr.mxu0 0.0
    %736 = vmatpush1.msra.mxu0 %v707
    %737 = vmatprep.subr.mxu0 0.0
    %738 = vmatpush1.msra.mxu0 %v706
    %739 = vmatprep.subr.mxu0 0.0
    %740 = vmatpush1.msra.mxu0 %v705
    %741 = vmatprep.subr.mxu0 0.0
    %742 = vmatpush1.msra.mxu0 %v704
    %743 = vmatprep.subr.mxu0 0.0
    %744 = vmatpush1.msra.mxu0 %v703
    %745 = vmatprep.subr.mxu0 0.0
    %746 = vmatpush1.msra.mxu0 %v702
    %747 = vmatprep.subr.mxu0 0.0
    %748 = vmatpush1.msra.mxu0 %v701
    %749 = vmatprep.subr.mxu0 0.0
    %750 = vmatpush1.msra.mxu0 %v700
    %751 = vmatprep.subr.mxu0 0.0
    %752 = vmatpush1.msra.mxu0 %v699
    %753 = vmatprep.subr.mxu0 0.0
    %754 = vmatpush1.msra.mxu0 %v698
    %755 = vmatprep.subr.mxu0 0.0
    %756 = vmatpush1.msra.mxu0 %v697
    %757 = vmatprep.subr.mxu0 0.0
    %758 = vmatpush1.msra.mxu0 %v696
    %759 = vmatprep.subr.mxu0 0.0
    %760 = vmatpush1.msra.mxu0 %v695
    %761 = vmatprep.subr.mxu0 0.0
    %762 = vmatpush1.msra.mxu0 %v694
    %763 = vmatprep.subr.mxu0 0.0
    %764 = vmatpush2.msra.mxu0 0.0
    %765 = vmatprep.subr.mxu0 0.0
    %766 = vmatpush2.msra.mxu0 0.0
    %767 = vmatprep.subr.mxu0 0.0
    %768 = vmatpush2.msra.mxu0 0.0
    %769 = vmatprep.subr.mxu0 0.0
    %770 = vmatpush2.msra.mxu0 0.0
    %771 = vmatprep.subr.mxu0 0.0
    %772 = vmatpush2.msra.mxu0 0.0
    %773 = vmatprep.subr.mxu0 0.0
    %774 = vmatpush2.msra.mxu0 0.0
    %775 = vmatprep.subr.mxu0 0.0
    %776 = vmatpush2.msra.mxu0 0.0
    %777 = vmatprep.subr.mxu0 0.0
    %778 = vmatpush2.msra.mxu0 0.0
    %779 = vmatprep.subr.mxu0 0.0
    %780 = vmatpush2.msra.mxu0 0.0
    %781 = vmatprep.subr.mxu0 0.0
    %782 = vmatpush2.msra.mxu0 0.0
    %783 = vmatprep.subr.mxu0 0.0
    %784 = vmatpush2.msra.mxu0 0.0
    %785 = vmatprep.subr.mxu0 0.0
    %786 = vmatpush2.msra.mxu0 0.0
    %787 = vmatprep.subr.mxu0 0.0
    %788 = vmatpush2.msra.mxu0 0.0
    %789 = vmatprep.subr.mxu0 0.0
    %790 = vmatpush2.msra.mxu0 0.0
    %791 = vmatprep.subr.mxu0 0.0
    %792 = vmatpush2.msra.mxu0 0.0
    %793 = vmatprep.subr.mxu0 0.0
    %794 = vmatpush2.msra.mxu0 0.0
    %795 = vmatprep.mubr.f32.mxu0 0.0
    %796 = vmatmul.mubr.f32.gmra.mxu0 %v188
    %v797 = vpop.f32.mrf.mxu0
    %v798 = vadd.f32 %v730, %v797
    %v799 = vpop.f32.mrf.mxu0
    %800 = vmatprep.mubr.f32.mxu0 0.0
    %801 = vmatmul.mubr.f32.gmra.mxu0 %v260
    %v802 = vpop.f32.mrf.mxu0
    %v803 = vadd.f32 %v730, %v802
    %v804 = vpop.f32.mrf.mxu0
    %805 = vmatprep.mubr.f32.mxu0 0.0
    %806 = vmatmul.mubr.f32.gmra.mxu0 %v332
    %v807 = vpop.f32.mrf.mxu0
    %v808 = vadd.f32 %v730, %v807
    %v809 = vpop.f32.mrf.mxu0
    %810 = vmatprep.mubr.f32.mxu0 0.0
    %811 = vmatmul.mubr.f32.gmra.mxu0 %v404
    %v812 = vpop.f32.mrf.mxu0
    %v813 = vadd.f32 %v730, %v812
    %v814 = vpop.f32.mrf.mxu0
    %815 = vmatprep.mubr.f32.mxu0 0.0
    %816 = vmatmul.mubr.f32.gmra.mxu0 %v476
    %v817 = vpop.f32.mrf.mxu0
    %v818 = vadd.f32 %v730, %v817
    %v819 = vpop.f32.mrf.mxu0
    %820 = vmatprep.mubr.f32.mxu0 0.0
    %821 = vmatmul.mubr.f32.gmra.mxu0 %v548
    %v822 = vpop.f32.mrf.mxu0
    %v823 = vadd.f32 %v730, %v822
    %v824 = vpop.f32.mrf.mxu0
    %825 = vmatprep.mubr.f32.mxu0 0.0
    %826 = vmatmul.mubr.f32.gmra.mxu0 %v620
    %v827 = vpop.f32.mrf.mxu0
    %v828 = vadd.f32 %v730, %v827
    %v829 = vpop.f32.mrf.mxu0
    %830 = vmatprep.mubr.f32.mxu0 0.0
    %831 = vmatmul.mubr.f32.gmra.mxu0 %v692
    %v832 = vpop.f32.mrf.mxu0
    %v833 = vadd.f32 %v730, %v832
    %v834 = vpop.f32.mrf.mxu0
    %835 = vdwg.mxu0
    %v836 = vtanh.pop %v798
    %837 = vmatprep.subr.mxu0 0.0
    %838 = vmatpush1.msra.mxu0 %v725
    %839 = vmatprep.subr.mxu0 0.0
    %840 = vmatpush1.msra.mxu0 %v724
    %841 = vmatprep.subr.mxu0 0.0
    %842 = vmatpush1.msra.mxu0 %v723
    %843 = vmatprep.subr.mxu0 0.0
    %844 = vmatpush1.msra.mxu0 %v722
    %845 = vmatprep.subr.mxu0 0.0
    %846 = vmatpush1.msra.mxu0 %v721
    %847 = vmatprep.subr.mxu0 0.0
    %848 = vmatpush1.msra.mxu0 %v720
    %849 = vmatprep.subr.mxu0 0.0
    %850 = vmatpush1.msra.mxu0 %v719
    %851 = vmatprep.subr.mxu0 0.0
    %852 = vmatpush1.msra.mxu0 %v718
    %853 = vmatprep.subr.mxu0 0.0
    %854 = vmatpush1.msra.mxu0 %v717
    %855 = vmatprep.subr.mxu0 0.0
    %856 = vmatpush1.msra.mxu0 %v716
    %857 = vmatprep.subr.mxu0 0.0
    %858 = vmatpush1.msra.mxu0 %v715
    %859 = vmatprep.subr.mxu0 0.0
    %860 = vmatpush1.msra.mxu0 %v714
    %861 = vmatprep.subr.mxu0 0.0
    %862 = vmatpush1.msra.mxu0 %v713
    %863 = vmatprep.subr.mxu0 0.0
    %864 = vmatpush1.msra.mxu0 %v712
    %865 = vmatprep.subr.mxu0 0.0
    %866 = vmatpush1.msra.mxu0 %v711
    %867 = vmatprep.subr.mxu0 0.0
    %868 = vmatpush1.msra.mxu0 %v710
    %869 = vmatprep.subr.mxu0 0.0
    %870 = vmatpush2.msra.mxu0 0.0
    %871 = vmatprep.subr.mxu0 0.0
    %872 = vmatpush2.msra.mxu0 0.0
    %873 = vmatprep.subr.mxu0 0.0
    %874 = vmatpush2.msra.mxu0 0.0
    %875 = vmatprep.subr.mxu0 0.0
    %876 = vmatpush2.msra.mxu0 0.0
    %877 = vmatprep.subr.mxu0 0.0
    %878 = vmatpush2.msra.mxu0 0.0
    %879 = vmatprep.subr.mxu0 0.0
    %880 = vmatpush2.msra.mxu0 0.0
    %881 = vmatprep.subr.mxu0 0.0
    %882 = vmatpush2.msra.mxu0 0.0
    %883 = vmatprep.subr.mxu0 0.0
    %884 = vmatpush2.msra.mxu0 0.0
    %885 = vmatprep.subr.mxu0 0.0
    %886 = vmatpush2.msra.mxu0 0.0
    %887 = vmatprep.subr.mxu0 0.0
    %888 = vmatpush2.msra.mxu0 0.0
    %889 = vmatprep.subr.mxu0 0.0
    %890 = vmatpush2.msra.mxu0 0.0
    %891 = vmatprep.subr.mxu0 0.0
    %892 = vmatpush2.msra.mxu0 0.0
    %893 = vmatprep.subr.mxu0 0.0
    %894 = vmatpush2.msra.mxu0 0.0
    %895 = vmatprep.subr.mxu0 0.0
    %896 = vmatpush2.msra.mxu0 0.0
    %897 = vmatprep.subr.mxu0 0.0
    %898 = vmatpush2.msra.mxu0 0.0
    %899 = vmatprep.subr.mxu0 0.0
    %900 = vmatpush2.msra.mxu0 0.0
    %901 = vmatprep.mubr.f32.mxu0 0.0
    %902 = vmatmul.mubr.f32.gmra.mxu0 %v836
    %v903 = vpop.f32.mrf.mxu0
    %v904 = vadd.f32 0.0, %v903
    %v905 = vpop.f32.mrf.mxu0
    %906 = vdwg.mxu0
    %v907 = vadd.f32 %v803, %v904
    %v908 = vtanh.pop %v907
    %909 = vmatprep.subr.mxu0 0.0
    %910 = vmatpush1.msra.mxu0 %v725
    %911 = vmatprep.subr.mxu0 0.0
    %912 = vmatpush1.msra.mxu0 %v724
    %913 = vmatprep.subr.mxu0 0.0
    %914 = vmatpush1.msra.mxu0 %v723
    %915 = vmatprep.subr.mxu0 0.0
    %916 = vmatpush1.msra.mxu0 %v722
    %917 = vmatprep.subr.mxu0 0.0
    %918 = vmatpush1.msra.mxu0 %v721
    %919 = vmatprep.subr.mxu0 0.0
    %920 = vmatpush1.msra.mxu0 %v720
    %921 = vmatprep.subr.mxu0 0.0
    %922 = vmatpush1.msra.mxu0 %v719
    %923 = vmatprep.subr.mxu0 0.0
    %924 = vmatpush1.msra.mxu0 %v718
    %925 = vmatprep.subr.mxu0 0.0
    %926 = vmatpush1.msra.mxu0 %v717
    %927 = vmatprep.subr.mxu0 0.0
    %928 = vmatpush1.msra.mxu0 %v716
    %929 = vmatprep.subr.mxu0 0.0
    %930 = vmatpush1.msra.mxu0 %v715
    %931 = vmatprep.subr.mxu0 0.0
    %932 = vmatpush1.msra.mxu0 %v714
    %933 = vmatprep.subr.mxu0 0.0
    %934 = vmatpush1.msra.mxu0 %v713
    %935 = vmatprep.subr.mxu0 0.0
    %936 = vmatpush1.msra.mxu0 %v712
    %937 = vmatprep.subr.mxu0 0.0
    %938 = vmatpush1.msra.mxu0 %v711
    %939 = vmatprep.subr.mxu0 0.0
    %940 = vmatpush1.msra.mxu0 %v710
    %941 = vmatprep.subr.mxu0 0.0
    %942 = vmatpush2.msra.mxu0 0.0
    %943 = vmatprep.subr.mxu0 0.0
    %944 = vmatpush2.msra.mxu0 0.0
    %945 = vmatprep.subr.mxu0 0.0
    %946 = vmatpush2.msra.mxu0 0.0
    %947 = vmatprep.subr.mxu0 0.0
    %948 = vmatpush2.msra.mxu0 0.0
    %949 = vmatprep.subr.mxu0 0.0
    %950 = vmatpush2.msra.mxu0 0.0
    %951 = vmatprep.subr.mxu0 0.0
    %952 = vmatpush2.msra.mxu0 0.0
    %953 = vmatprep.subr.mxu0 0.0
    %954 = vmatpush2.msra.mxu0 0.0
    %955 = vmatprep.subr.mxu0 0.0
    %956 = vmatpush2.msra.mxu0 0.0
    %957 = vmatprep.subr.mxu0 0.0
    %958 = vmatpush2.msra.mxu0 0.0
    %959 = vmatprep.subr.mxu0 0.0
    %960 = vmatpush2.msra.mxu0 0.0
    %961 = vmatprep.subr.mxu0 0.0
    %962 = vmatpush2.msra.mxu0 0.0
    %963 = vmatprep.subr.mxu0 0.0
    %964 = vmatpush2.msra.mxu0 0.0
    %965 = vmatprep.subr.mxu0 0.0
    %966 = vmatpush2.msra.mxu0 0.0
    %967 = vmatprep.subr.mxu0 0.0
    %968 = vmatpush2.msra.mxu0 0.0
    %969 = vmatprep.subr.mxu0 0.0
    %970 = vmatpush2.msra.mxu0 0.0
    %971 = vmatprep.subr.mxu0 0.0
    %972 = vmatpush2.msra.mxu0 0.0
    %973 = vmatprep.mubr.f32.mxu0 0.0
    %974 = vmatmul.mubr.f32.gmra.mxu0 %v908
    %v975 = vpop.f32.mrf.mxu0
    %v976 = vadd.f32 0.0, %v975
    %v977 = vpop.f32.mrf.mxu0
    %978 = vdwg.mxu0
    %v979 = vadd.f32 %v808, %v976
    %v980 = vtanh.pop %v979
    %981 = vmatprep.subr.mxu0 0.0
    %982 = vmatpush1.msra.mxu0 %v725
    %983 = vmatprep.subr.mxu0 0.0
    %984 = vmatpush1.msra.mxu0 %v724
    %985 = vmatprep.subr.mxu0 0.0
    %986 = vmatpush1.msra.mxu0 %v723
    %987 = vmatprep.subr.mxu0 0.0
    %988 = vmatpush1.msra.mxu0 %v722
    %989 = vmatprep.subr.mxu0 0.0
    %990 = vmatpush1.msra.mxu0 %v721
    %991 = vmatprep.subr.mxu0 0.0
    %992 = vmatpush1.msra.mxu0 %v720
    %993 = vmatprep.subr.mxu0 0.0
    %994 = vmatpush1.msra.mxu0 %v719
    %995 = vmatprep.subr.mxu0 0.0
    %996 = vmatpush1.msra.mxu0 %v718
    %997 = vmatprep.subr.mxu0 0.0
    %998 = vmatpush1.msra.mxu0 %v717
    %999 = vmatprep.subr.mxu0 0.0
    %1000 = vmatpush1.msra.mxu0 %v716
    %1001 = vmatprep.subr.mxu0 0.0
    %1002 = vmatpush1.msra.mxu0 %v715
    %1003 = vmatprep.subr.mxu0 0.0
    %1004 = vmatpush1.msra.mxu0 %v714
    %1005 = vmatprep.subr.mxu0 0.0
    %1006 = vmatpush1.msra.mxu0 %v713
    %1007 = vmatprep.subr.mxu0 0.0
    %1008 = vmatpush1.msra.mxu0 %v712
    %1009 = vmatprep.subr.mxu0 0.0
    %1010 = vmatpush1.msra.mxu0 %v711
    %1011 = vmatprep.subr.mxu0 0.0
    %1012 = vmatpush1.msra.mxu0 %v710
    %1013 = vmatprep.subr.mxu0 0.0
    %1014 = vmatpush2.msra.mxu0 0.0
    %1015 = vmatprep.subr.mxu0 0.0
    %1016 = vmatpush2.msra.mxu0 0.0
    %1017 = vmatprep.subr.mxu0 0.0
    %1018 = vmatpush2.msra.mxu0 0.0
    %1019 = vmatprep.subr.mxu0 0.0
    %1020 = vmatpush2.msra.mxu0 0.0
    %1021 = vmatprep.subr.mxu0 0.0
    %1022 = vmatpush2.msra.mxu0 0.0
    %1023 = vmatprep.subr.mxu0 0.0
    %1024 = vmatpush2.msra.mxu0 0.0
    %1025 = vmatprep.subr.mxu0 0.0
    %1026 = vmatpush2.msra.mxu0 0.0
    %1027 = vmatprep.subr.mxu0 0.0
    %1028 = vmatpush2.msra.mxu0 0.0
    %1029 = vmatprep.subr.mxu0 0.0
    %1030 = vmatpush2.msra.mxu0 0.0
    %1031 = vmatprep.subr.mxu0 0.0
    %1032 = vmatpush2.msra.mxu0 0.0
    %1033 = vmatprep.subr.mxu0 0.0
    %1034 = vmatpush2.msra.mxu0 0.0
    %1035 = vmatprep.subr.mxu0 0.0
    %1036 = vmatpush2.msra.mxu0 0.0
    %1037 = vmatprep.subr.mxu0 0.0
    %1038 = vmatpush2.msra.mxu0 0.0
    %1039 = vmatprep.subr.mxu0 0.0
    %1040 = vmatpush2.msra.mxu0 0.0
    %1041 = vmatprep.subr.mxu0 0.0
    %1042 = vmatpush2.msra.mxu0 0.0
    %1043 = vmatprep.subr.mxu0 0.0
    %1044 = vmatpush2.msra.mxu0 0.0
    %1045 = vmatprep.mubr.f32.mxu0 0.0
    %1046 = vmatmul.mubr.f32.gmra.mxu0 %v980
    %v1047 = vpop.f32.mrf.mxu0
    %v1048 = vadd.f32 0.0, %v1047
    %v1049 = vpop.f32.mrf.mxu0
    %1050 = vdwg.mxu0
    %v1051 = vadd.f32 %v813, %v1048
    %v1052 = vtanh.pop %v1051
    %1053 = vmatprep.subr.mxu0 0.0
    %1054 = vmatpush1.msra.mxu0 %v725
    %1055 = vmatprep.subr.mxu0 0.0
    %1056 = vmatpush1.msra.mxu0 %v724
    %1057 = vmatprep.subr.mxu0 0.0
    %1058 = vmatpush1.msra.mxu0 %v723
    %1059 = vmatprep.subr.mxu0 0.0
    %1060 = vmatpush1.msra.mxu0 %v722
    %1061 = vmatprep.subr.mxu0 0.0
    %1062 = vmatpush1.msra.mxu0 %v721
    %1063 = vmatprep.subr.mxu0 0.0
    %1064 = vmatpush1.msra.mxu0 %v720
    %1065 = vmatprep.subr.mxu0 0.0
    %1066 = vmatpush1.msra.mxu0 %v719
    %1067 = vmatprep.subr.mxu0 0.0
    %1068 = vmatpush1.msra.mxu0 %v718
    %1069 = vmatprep.subr.mxu0 0.0
    %1070 = vmatpush1.msra.mxu0 %v717
    %1071 = vmatprep.subr.mxu0 0.0
    %1072 = vmatpush1.msra.mxu0 %v716
    %1073 = vmatprep.subr.mxu0 0.0
    %1074 = vmatpush1.msra.mxu0 %v715
    %1075 = vmatprep.subr.mxu0 0.0
    %1076 = vmatpush1.msra.mxu0 %v714
    %1077 = vmatprep.subr.mxu0 0.0
    %1078 = vmatpush1.msra.mxu0 %v713
    %1079 = vmatprep.subr.mxu0 0.0
    %1080 = vmatpush1.msra.mxu0 %v712
    %1081 = vmatprep.subr.mxu0 0.0
    %1082 = vmatpush1.msra.mxu0 %v711
    %1083 = vmatprep.subr.mxu0 0.0
    %1084 = vmatpush1.msra.mxu0 %v710
    %1085 = vmatprep.subr.mxu0 0.0
    %1086 = vmatpush2.msra.mxu0 0.0
    %1087 = vmatprep.subr.mxu0 0.0
    %1088 = vmatpush2.msra.mxu0 0.0
    %1089 = vmatprep.subr.mxu0 0.0
    %1090 = vmatpush2.msra.mxu0 0.0
    %1091 = vmatprep.subr.mxu0 0.0
    %1092 = vmatpush2.msra.mxu0 0.0
    %1093 = vmatprep.subr.mxu0 0.0
    %1094 = vmatpush2.msra.mxu0 0.0
    %1095 = vmatprep.subr.mxu0 0.0
    %1096 = vmatpush2.msra.mxu0 0.0
    %1097 = vmatprep.subr.mxu0 0.0
    %1098 = vmatpush2.msra.mxu0 0.0
    %1099 = vmatprep.subr.mxu0 0.0
    %1100 = vmatpush2.msra.mxu0 0.0
    %1101 = vmatprep.subr.mxu0 0.0
    %1102 = vmatpush2.msra.mxu0 0.0
    %1103 = vmatprep.subr.mxu0 0.0
    %1104 = vmatpush2.msra.mxu0 0.0
    %1105 = vmatprep.subr.mxu0 0.0
    %1106 = vmatpush2.msra.mxu0 0.0
    %1107 = vmatprep.subr.mxu0 0.0
    %1108 = vmatpush2.msra.mxu0 0.0
    %1109 = vmatprep.subr.mxu0 0.0
    %1110 = vmatpush2.msra.mxu0 0.0
    %1111 = vmatprep.subr.mxu0 0.0
    %1112 = vmatpush2.msra.mxu0 0.0
    %1113 = vmatprep.subr.mxu0 0.0
    %1114 = vmatpush2.msra.mxu0 0.0
    %1115 = vmatprep.subr.mxu0 0.0
    %1116 = vmatpush2.msra.mxu0 0.0
    %1117 = vmatprep.mubr.f32.mxu0 0.0
    %1118 = vmatmul.mubr.f32.gmra.mxu0 %v1052
    %v1119 = vpop.f32.mrf.mxu0
    %v1120 = vadd.f32 0.0, %v1119
    %v1121 = vpop.f32.mrf.mxu0
    %1122 = vdwg.mxu0
    %v1123 = vadd.f32 %v818, %v1120
    %v1124 = vtanh.pop %v1123
    %1125 = vmatprep.subr.mxu0 0.0
    %1126 = vmatpush1.msra.mxu0 %v725
    %1127 = vmatprep.subr.mxu0 0.0
    %1128 = vmatpush1.msra.mxu0 %v724
    %1129 = vmatprep.subr.mxu0 0.0
    %1130 = vmatpush1.msra.mxu0 %v723
    %1131 = vmatprep.subr.mxu0 0.0
    %1132 = vmatpush1.msra.mxu0 %v722
    %1133 = vmatprep.subr.mxu0 0.0
    %1134 = vmatpush1.msra.mxu0 %v721
    %1135 = vmatprep.subr.mxu0 0.0
    %1136 = vmatpush1.msra.mxu0 %v720
    %1137 = vmatprep.subr.mxu0 0.0
    %1138 = vmatpush1.msra.mxu0 %v719
    %1139 = vmatprep.subr.mxu0 0.0
    %1140 = vmatpush1.msra.mxu0 %v718
    %1141 = vmatprep.subr.mxu0 0.0
    %1142 = vmatpush1.msra.mxu0 %v717
    %1143 = vmatprep.subr.mxu0 0.0
    %1144 = vmatpush1.msra.mxu0 %v716
    %1145 = vmatprep.subr.mxu0 0.0
    %1146 = vmatpush1.msra.mxu0 %v715
    %1147 = vmatprep.subr.mxu0 0.0
    %1148 = vmatpush1.msra.mxu0 %v714
    %1149 = vmatprep.subr.mxu0 0.0
    %1150 = vmatpush1.msra.mxu0 %v713
    %1151 = vmatprep.subr.mxu0 0.0
    %1152 = vmatpush1.msra.mxu0 %v712
    %1153 = vmatprep.subr.mxu0 0.0
    %1154 = vmatpush1.msra.mxu0 %v711
    %1155 = vmatprep.subr.mxu0 0.0
    %1156 = vmatpush1.msra.mxu0 %v710
    %1157 = vmatprep.subr.mxu0 0.0
    %1158 = vmatpush2.msra.mxu0 0.0
    %1159 = vmatprep.subr.mxu0 0.0
    %1160 = vmatpush2.msra.mxu0 0.0
    %1161 = vmatprep.subr.mxu0 0.0
    %1162 = vmatpush2.msra.mxu0 0.0
    %1163 = vmatprep.subr.mxu0 0.0
    %1164 = vmatpush2.msra.mxu0 0.0
    %1165 = vmatprep.subr.mxu0 0.0
    %1166 = vmatpush2.msra.mxu0 0.0
    %1167 = vmatprep.subr.mxu0 0.0
    %1168 = vmatpush2.msra.mxu0 0.0
    %1169 = vmatprep.subr.mxu0 0.0
    %1170 = vmatpush2.msra.mxu0 0.0
    %1171 = vmatprep.subr.mxu0 0.0
    %1172 = vmatpush2.msra.mxu0 0.0
    %1173 = vmatprep.subr.mxu0 0.0
    %1174 = vmatpush2.msra.mxu0 0.0
    %1175 = vmatprep.subr.mxu0 0.0
    %1176 = vmatpush2.msra.mxu0 0.0
    %1177 = vmatprep.subr.mxu0 0.0
    %1178 = vmatpush2.msra.mxu0 0.0
    %1179 = vmatprep.subr.mxu0 0.0
    %1180 = vmatpush2.msra.mxu0 0.0
    %1181 = vmatprep.subr.mxu0 0.0
    %1182 = vmatpush2.msra.mxu0 0.0
    %1183 = vmatprep.subr.mxu0 0.0
    %1184 = vmatpush2.msra.mxu0 0.0
    %1185 = vmatprep.subr.mxu0 0.0
    %1186 = vmatpush2.msra.mxu0 0.0
    %1187 = vmatprep.subr.mxu0 0.0
    %1188 = vmatpush2.msra.mxu0 0.0
    %1189 = vmatprep.mubr.f32.mxu0 0.0
    %1190 = vmatmul.mubr.f32.gmra.mxu0 %v1124
    %v1191 = vpop.f32.mrf.mxu0
    %v1192 = vadd.f32 0.0, %v1191
    %v1193 = vpop.f32.mrf.mxu0
    %1194 = vdwg.mxu0
    %v1195 = vadd.f32 %v823, %v1192
    %v1196 = vtanh.pop %v1195
    %1197 = vmatprep.subr.mxu0 0.0
    %1198 = vmatpush1.msra.mxu0 %v725
    %1199 = vmatprep.subr.mxu0 0.0
    %1200 = vmatpush1.msra.mxu0 %v724
    %1201 = vmatprep.subr.mxu0 0.0
    %1202 = vmatpush1.msra.mxu0 %v723
    %1203 = vmatprep.subr.mxu0 0.0
    %1204 = vmatpush1.msra.mxu0 %v722
    %1205 = vmatprep.subr.mxu0 0.0
    %1206 = vmatpush1.msra.mxu0 %v721
    %1207 = vmatprep.subr.mxu0 0.0
    %1208 = vmatpush1.msra.mxu0 %v720
    %1209 = vmatprep.subr.mxu0 0.0
    %1210 = vmatpush1.msra.mxu0 %v719
    %1211 = vmatprep.subr.mxu0 0.0
    %1212 = vmatpush1.msra.mxu0 %v718
    %1213 = vmatprep.subr.mxu0 0.0
    %1214 = vmatpush1.msra.mxu0 %v717
    %1215 = vmatprep.subr.mxu0 0.0
    %1216 = vmatpush1.msra.mxu0 %v716
    %1217 = vmatprep.subr.mxu0 0.0
    %1218 = vmatpush1.msra.mxu0 %v715
    %1219 = vmatprep.subr.mxu0 0.0
    %1220 = vmatpush1.msra.mxu0 %v714
    %1221 = vmatprep.subr.mxu0 0.0
    %1222 = vmatpush1.msra.mxu0 %v713
    %1223 = vmatprep.subr.mxu0 0.0
    %1224 = vmatpush1.msra.mxu0 %v712
    %1225 = vmatprep.subr.mxu0 0.0
    %1226 = vmatpush1.msra.mxu0 %v711
    %1227 = vmatprep.subr.mxu0 0.0
    %1228 = vmatpush1.msra.mxu0 %v710
    %1229 = vmatprep.subr.mxu0 0.0
    %1230 = vmatpush2.msra.mxu0 0.0
    %1231 = vmatprep.subr.mxu0 0.0
    %1232 = vmatpush2.msra.mxu0 0.0
    %1233 = vmatprep.subr.mxu0 0.0
    %1234 = vmatpush2.msra.mxu0 0.0
    %1235 = vmatprep.subr.mxu0 0.0
    %1236 = vmatpush2.msra.mxu0 0.0
    %1237 = vmatprep.subr.mxu0 0.0
    %1238 = vmatpush2.msra.mxu0 0.0
    %1239 = vmatprep.subr.mxu0 0.0
    %1240 = vmatpush2.msra.mxu0 0.0
    %1241 = vmatprep.subr.mxu0 0.0
    %1242 = vmatpush2.msra.mxu0 0.0
    %1243 = vmatprep.subr.mxu0 0.0
    %1244 = vmatpush2.msra.mxu0 0.0
    %1245 = vmatprep.subr.mxu0 0.0
    %1246 = vmatpush2.msra.mxu0 0.0
    %1247 = vmatprep.subr.mxu0 0.0
    %1248 = vmatpush2.msra.mxu0 0.0
    %1249 = vmatprep.subr.mxu0 0.0
    %1250 = vmatpush2.msra.mxu0 0.0
    %1251 = vmatprep.subr.mxu0 0.0
    %1252 = vmatpush2.msra.mxu0 0.0
    %1253 = vmatprep.subr.mxu0 0.0
    %1254 = vmatpush2.msra.mxu0 0.0
    %1255 = vmatprep.subr.mxu0 0.0
    %1256 = vmatpush2.msra.mxu0 0.0
    %1257 = vmatprep.subr.mxu0 0.0
    %1258 = vmatpush2.msra.mxu0 0.0
    %1259 = vmatprep.subr.mxu0 0.0
    %1260 = vmatpush2.msra.mxu0 0.0
    %1261 = vmatprep.mubr.f32.mxu0 0.0
    %1262 = vmatmul.mubr.f32.gmra.mxu0 %v1196
    %v1263 = vpop.f32.mrf.mxu0
    %v1264 = vadd.f32 0.0, %v1263
    %v1265 = vpop.f32.mrf.mxu0
    %1266 = vdwg.mxu0
    %v1267 = vadd.f32 %v828, %v1264
    %v1268 = vtanh.pop %v1267
    %1269 = vmatprep.subr.mxu0 0.0
    %1270 = vmatpush1.msra.mxu0 %v725
    %1271 = vmatprep.subr.mxu0 0.0
    %1272 = vmatpush1.msra.mxu0 %v724
    %1273 = vmatprep.subr.mxu0 0.0
    %1274 = vmatpush1.msra.mxu0 %v723
    %1275 = vmatprep.subr.mxu0 0.0
    %1276 = vmatpush1.msra.mxu0 %v722
    %1277 = vmatprep.subr.mxu0 0.0
    %1278 = vmatpush1.msra.mxu0 %v721
    %1279 = vmatprep.subr.mxu0 0.0
    %1280 = vmatpush1.msra.mxu0 %v720
    %1281 = vmatprep.subr.mxu0 0.0
    %1282 = vmatpush1.msra.mxu0 %v719
    %1283 = vmatprep.subr.mxu0 0.0
    %1284 = vmatpush1.msra.mxu0 %v718
    %1285 = vmatprep.subr.mxu0 0.0
    %1286 = vmatpush1.msra.mxu0 %v717
    %1287 = vmatprep.subr.mxu0 0.0
    %1288 = vmatpush1.msra.mxu0 %v716
    %1289 = vmatprep.subr.mxu0 0.0
    %1290 = vmatpush1.msra.mxu0 %v715
    %1291 = vmatprep.subr.mxu0 0.0
    %1292 = vmatpush1.msra.mxu0 %v714
    %1293 = vmatprep.subr.mxu0 0.0
    %1294 = vmatpush1.msra.mxu0 %v713
    %1295 = vmatprep.subr.mxu0 0.0
    %1296 = vmatpush1.msra.mxu0 %v712
    %1297 = vmatprep.subr.mxu0 0.0
    %1298 = vmatpush1.msra.mxu0 %v711
    %1299 = vmatprep.subr.mxu0 0.0
    %1300 = vmatpush1.msra.mxu0 %v710
    %1301 = vmatprep.subr.mxu0 0.0
    %1302 = vmatpush2.msra.mxu0 0.0
    %1303 = vmatprep.subr.mxu0 0.0
    %1304 = vmatpush2.msra.mxu0 0.0
    %1305 = vmatprep.subr.mxu0 0.0
    %1306 = vmatpush2.msra.mxu0 0.0
    %1307 = vmatprep.subr.mxu0 0.0
    %1308 = vmatpush2.msra.mxu0 0.0
    %1309 = vmatprep.subr.mxu0 0.0
    %1310 = vmatpush2.msra.mxu0 0.0
    %1311 = vmatprep.subr.mxu0 0.0
    %1312 = vmatpush2.msra.mxu0 0.0
    %1313 = vmatprep.subr.mxu0 0.0
    %1314 = vmatpush2.msra.mxu0 0.0
    %1315 = vmatprep.subr.mxu0 0.0
    %1316 = vmatpush2.msra.mxu0 0.0
    %1317 = vmatprep.subr.mxu0 0.0
    %1318 = vmatpush2.msra.mxu0 0.0
    %1319 = vmatprep.subr.mxu0 0.0
    %1320 = vmatpush2.msra.mxu0 0.0
    %1321 = vmatprep.subr.mxu0 0.0
    %1322 = vmatpush2.msra.mxu0 0.0
    %1323 = vmatprep.subr.mxu0 0.0
    %1324 = vmatpush2.msra.mxu0 0.0
    %1325 = vmatprep.subr.mxu0 0.0
    %1326 = vmatpush2.msra.mxu0 0.0
    %1327 = vmatprep.subr.mxu0 0.0
    %1328 = vmatpush2.msra.mxu0 0.0
    %1329 = vmatprep.subr.mxu0 0.0
    %1330 = vmatpush2.msra.mxu0 0.0
    %1331 = vmatprep.subr.mxu0 0.0
    %1332 = vmatpush2.msra.mxu0 0.0
    %1333 = vmatprep.mubr.f32.mxu0 0.0
    %1334 = vmatmul.mubr.f32.gmra.mxu0 %v1268
    %v1335 = vpop.f32.mrf.mxu0
    %v1336 = vadd.f32 0.0, %v1335
    %v1337 = vpop.f32.mrf.mxu0
    %1338 = vdwg.mxu0
    %v1339 = vadd.f32 %v833, %v1336
    %v1340 = vtanh.pop %v1339
    %1341 = vst [vmem:[#allocation5 + $0x8] sm:$0xff] %v1340
    %v1342 = vld [vmem:[#allocation2 + $0x198] sm:$0xff]
    %v1343 = vld [vmem:[#allocation2 + $0x1a0] sm:$0xff]
    %v1344 = vld [vmem:[#allocation2 + $0x1a8] sm:$0xff]
    %v1345 = vld [vmem:[#allocation2 + $0x1b0] sm:$0xff]
    %v1346 = vld [vmem:[#allocation2 + $0x1b8] sm:$0xff]
    %v1347 = vld [vmem:[#allocation2 + $0x1c0] sm:$0xff]
    %v1348 = vld [vmem:[#allocation2 + $0x1c8] sm:$0xff]
    %v1349 = vld [vmem:[#allocation2 + $0x1d0] sm:$0xff]
    %v1350 = vld [vmem:[#allocation2 + $0x1d8] sm:$0xff]
    %v1351 = vld [vmem:[#allocation2 + $0x1e0] sm:$0xff]
    %v1352 = vld [vmem:[#allocation2 + $0x1e8] sm:$0xff]
    %v1353 = vld [vmem:[#allocation2 + $0x1f0] sm:$0xff]
    %v1354 = vld [vmem:[#allocation2 + $0x1f8] sm:$0xff]
    %v1355 = vld [vmem:[#allocation2 + $0x200] sm:$0xff]
    %v1356 = vld [vmem:[#allocation2 + $0x208] sm:$0xff]
    %v1357 = vld [vmem:[#allocation2 + $0x210] sm:$0xff]
    %v1358 = vld [vmem:[#allocation2 + $0x218] sm:$0x1]
    %v1359 = vlaneseq
    %v1360 = vshrl.u32 %v1359, 7
    %v1361 = vsub.s32 0, %v1360
    %v1362 = vrot.slane %v1358, %v1361
    %1363 = vmatprep.subr.mxu0 0.0
    %1364 = vmatpush1.msra.mxu0 %v1357
    %1365 = vmatprep.subr.mxu0 0.0
    %1366 = vmatpush1.msra.mxu0 %v1356
    %1367 = vmatprep.subr.mxu0 0.0
    %1368 = vmatpush1.msra.mxu0 %v1355
    %1369 = vmatprep.subr.mxu0 0.0
    %1370 = vmatpush1.msra.mxu0 %v1354
    %1371 = vmatprep.subr.mxu0 0.0
    %1372 = vmatpush1.msra.mxu0 %v1353
    %1373 = vmatprep.subr.mxu0 0.0
    %1374 = vmatpush1.msra.mxu0 %v1352
    %1375 = vmatprep.subr.mxu0 0.0
    %1376 = vmatpush1.msra.mxu0 %v1351
    %1377 = vmatprep.subr.mxu0 0.0
    %1378 = vmatpush1.msra.mxu0 %v1350
    %1379 = vmatprep.subr.mxu0 0.0
    %1380 = vmatpush1.msra.mxu0 %v1349
    %1381 = vmatprep.subr.mxu0 0.0
    %1382 = vmatpush1.msra.mxu0 %v1348
    %1383 = vmatprep.subr.mxu0 0.0
    %1384 = vmatpush1.msra.mxu0 %v1347
    %1385 = vmatprep.subr.mxu0 0.0
    %1386 = vmatpush1.msra.mxu0 %v1346
    %1387 = vmatprep.subr.mxu0 0.0
    %1388 = vmatpush1.msra.mxu0 %v1345
    %1389 = vmatprep.subr.mxu0 0.0
    %1390 = vmatpush1.msra.mxu0 %v1344
    %1391 = vmatprep.subr.mxu0 0.0
    %1392 = vmatpush1.msra.mxu0 %v1343
    %1393 = vmatprep.subr.mxu0 0.0
    %1394 = vmatpush1.msra.mxu0 %v1342
    %1395 = vmatprep.subr.mxu0 0.0
    %1396 = vmatpush2.msra.mxu0 0.0
    %1397 = vmatprep.subr.mxu0 0.0
    %1398 = vmatpush2.msra.mxu0 0.0
    %1399 = vmatprep.subr.mxu0 0.0
    %1400 = vmatpush2.msra.mxu0 0.0
    %1401 = vmatprep.subr.mxu0 0.0
    %1402 = vmatpush2.msra.mxu0 0.0
    %1403 = vmatprep.subr.mxu0 0.0
    %1404 = vmatpush2.msra.mxu0 0.0
    %1405 = vmatprep.subr.mxu0 0.0
    %1406 = vmatpush2.msra.mxu0 0.0
    %1407 = vmatprep.subr.mxu0 0.0
    %1408 = vmatpush2.msra.mxu0 0.0
    %1409 = vmatprep.subr.mxu0 0.0
    %1410 = vmatpush2.msra.mxu0 0.0
    %1411 = vmatprep.subr.mxu0 0.0
    %1412 = vmatpush2.msra.mxu0 0.0
    %1413 = vmatprep.subr.mxu0 0.0
    %1414 = vmatpush2.msra.mxu0 0.0
    %1415 = vmatprep.subr.mxu0 0.0
    %1416 = vmatpush2.msra.mxu0 0.0
    %1417 = vmatprep.subr.mxu0 0.0
    %1418 = vmatpush2.msra.mxu0 0.0
    %1419 = vmatprep.subr.mxu0 0.0
    %1420 = vmatpush2.msra.mxu0 0.0
    %1421 = vmatprep.subr.mxu0 0.0
    %1422 = vmatpush2.msra.mxu0 0.0
    %1423 = vmatprep.subr.mxu0 0.0
    %1424 = vmatpush2.msra.mxu0 0.0
    %1425 = vmatprep.subr.mxu0 0.0
    %1426 = vmatpush2.msra.mxu0 0.0
    %1427 = vmatprep.mubr.f32.mxu0 0.0
    %1428 = vmatmul.mubr.f32.gmra.mxu0 %v836
    %v1429 = vpop.f32.mrf.mxu0
    %v1430 = vadd.f32 %v1362, %v1429
    %v1431 = vpop.f32.mrf.mxu0
    %1432 = vmatprep.mubr.f32.mxu0 0.0
    %1433 = vmatmul.mubr.f32.gmra.mxu0 %v908
    %v1434 = vpop.f32.mrf.mxu0
    %v1435 = vadd.f32 %v1362, %v1434
    %v1436 = vpop.f32.mrf.mxu0
    %1437 = vmatprep.mubr.f32.mxu0 0.0
    %1438 = vmatmul.mubr.f32.gmra.mxu0 %v980
    %v1439 = vpop.f32.mrf.mxu0
    %v1440 = vadd.f32 %v1362, %v1439
    %v1441 = vpop.f32.mrf.mxu0
    %1442 = vmatprep.mubr.f32.mxu0 0.0
    %1443 = vmatmul.mubr.f32.gmra.mxu0 %v1052
    %v1444 = vpop.f32.mrf.mxu0
    %v1445 = vadd.f32 %v1362, %v1444
    %v1446 = vpop.f32.mrf.mxu0
    %1447 = vmatprep.mubr.f32.mxu0 0.0
    %1448 = vmatmul.mubr.f32.gmra.mxu0 %v1124
    %v1449 = vpop.f32.mrf.mxu0
    %v1450 = vadd.f32 %v1362, %v1449
    %v1451 = vpop.f32.mrf.mxu0
    %1452 = vmatprep.mubr.f32.mxu0 0.0
    %1453 = vmatmul.mubr.f32.gmra.mxu0 %v1196
    %v1454 = vpop.f32.mrf.mxu0
    %v1455 = vadd.f32 %v1362, %v1454
    %v1456 = vpop.f32.mrf.mxu0
    %1457 = vmatprep.mubr.f32.mxu0 0.0
    %1458 = vmatmul.mubr.f32.gmra.mxu0 %v1268
    %v1459 = vpop.f32.mrf.mxu0
    %v1460 = vadd.f32 %v1362, %v1459
    %v1461 = vpop.f32.mrf.mxu0
    %1462 = vmatprep.mubr.f32.mxu0 0.0
    %1463 = vmatmul.mubr.f32.gmra.mxu0 %v1340
    %v1464 = vpop.f32.mrf.mxu0
    %v1465 = vadd.f32 %v1362, %v1464
    %v1466 = vpop.f32.mrf.mxu0
    %1467 = vdwg.mxu0
    %1468 = vst [vmem:[%s2] sm:$0xff] %v1430
    %1469 = vst [vmem:[%s2 + $0x8] sm:$0xff] %v1435
    %1470 = vst [vmem:[%s2 + $0x10] sm:$0xff] %v1440
    %1471 = vst [vmem:[%s2 + $0x18] sm:$0xff] %v1445
    %1472 = vst [vmem:[%s2 + $0x20] sm:$0xff] %v1450
    %1473 = vst [vmem:[%s2 + $0x28] sm:$0xff] %v1455
    %1474 = vst [vmem:[%s2 + $0x30] sm:$0xff] %v1460
    %1475 = vst [vmem:[%s2 + $0x38] sm:$0xff] %v1465
    // Predicated region
    $region14: #{forward.1} parent=1 // pred_check
      _
    $region15: #{forward.1} parent=1 // pred_check_branch
      %1477 = sbr.rel (0) target = $region17
    $region16: #{forward.1} parent=1 // pred_region
      _
    $region17: #{forward.1} parent=1 // pred_fallthru
      _
    // Predicated region
    $region18: #{forward.1} parent=1 // pred_check
      _
    $region19: #{forward.1} parent=1 // pred_check_branch
      %1479 = sbr.rel (0) target = $region21
    $region20: #{forward.1} parent=1 // pred_region
      %s1481 = ssub.s32 256, 256
      %1482 = vsyncadd [#allocation4], %s1481
      %s1483 = sshll.u32 [#allocation5], 4
      %s1484 = int_to_ptr.vmem [resolvable:$true] %s1483
      %1489 = dma.vmem_to_hbm [thread:$0]  %s1484, 256, %s3, [#allocation4], 128, 128, 8
    $region21: #{forward.1} parent=1 // pred_fallthru
      _
    // Predicated region
    $region22: #{forward.1} parent=1 // pred_check
      _
    $region23: #{forward.1} parent=1 // pred_check_branch
      %1491 = sbr.rel (0) target = $region25
    $region24: #{forward.1} parent=1 // pred_region
      _
    $region25: #{forward.1} parent=1 // pred_fallthru
      _
    // Predicated region
    $region26: #{forward.1} parent=1 // pred_check
      _
    $region27: #{forward.1} parent=1 // pred_check_branch
      %1493 = sbr.rel (0) target = $region29
    $region28: #{forward.1} parent=1 // pred_region
      %1494 = dma.done [#allocation4], 256
    $region29: #{forward.1} parent=1 // pred_fallthru
      _
    %1495 = vsyncpa [#allocation3], 1
    %1496 = vsyncpa [#allocation4], 1

</llo_original>
